<compile_context>
chip_gen: v7x
topology: tpu7x:2x2x1
jax: 0.10.0
libtpu: 0.0.40
codegen_flags: <defaults>
</compile_context>

<pallas_src>
import jax
import jax.numpy as jnp
import numpy as np
from jax.experimental import pallas as pl
from jax.experimental.pallas import tpu as pltpu


_TAPS = [(dh, dw) for dh in (-1, 0, 1) for dw in (-1, 0, 1)]


# ----------------------------------------------------------------------------
# Fused kernel factory.  One grid step processes NB images concatenated along
# the lane axis as a (Cin, L = NB*H*W) slab.
# ----------------------------------------------------------------------------
def _make_kernel(H, W, Cin, Cout, NB):
    HW = H * W
    L = NB * HW
    K = 2 * 9 * Cin
    pow2 = ((H & (H - 1)) == 0) and ((W & (W - 1)) == 0)
    log2w = W.bit_length() - 1

    def kernel(x_ref, w_ref, b_ref, o_ref, im_ref):
        # x_ref : (1, Cin, L)   NB images concatenated along the lane axis
        # w_ref : (Cout, K)     fused weight slab: 9 full-res taps (with the
        #                       double-scale branch folded in) + 9 dilated taps
        # b_ref : (Cout, 1)     3 * bias (one bias per branch)
        # o_ref : (1, Cout, L)
        # im_ref: (K, L)        im2col scratch, fully rewritten every step
        xf = x_ref[0].astype(jnp.float32)                    # (Cin, L)

        # per-lane row / column index inside each HxW image
        lane = jax.lax.broadcasted_iota(jnp.int32, (1, L), 1)
        if pow2:
            cidx = jnp.bitwise_and(lane, W - 1)
            ridx = jnp.bitwise_and(lane >> log2w, H - 1)
        else:
            # TODO(synk): non power-of-two H/W relies on Mosaic int div/mod lowering.
            cidx = lane % W
            ridx = (lane // W) % H

        # ---- x1_full[h,w] = x[2*(h//2), 2*(w//2)]: the nearest-downsampled
        # image replicated back to full resolution (constant on 2x2 blocks).
        # Built with 3 rolls + parity selects -- no gather, no dense matrix.
        pr = jnp.bitwise_and(ridx, 1)
        pc = jnp.bitwise_and(cidx, 1)
        x1f = xf
        for ph in (0, 1):
            for pw in (0, 1):
                if ph == 0 and pw == 0:
                    continue
                sel = (pr == ph) & (pc == pw)
                x1f = jnp.where(sel, jnp.roll(xf, ph * W + pw, axis=1), x1f)

        # ---- im2col: 9 full-resolution taps on x (double-scale branch folded
        # into the weights host-side) + 9 dilation-2 taps on x1_full (the
        # half-scale branch expressed directly at full resolution).
        # Border masks zero exactly the lanes where a roll would wrap within /
        # across images, so multi-image lane concatenation stays exact.
        def emit(t_base, src, dil):
            for t, (dh, dw) in enumerate(_TAPS):
                s = dil * (dh * W + dw)
                v = src if s == 0 else jnp.roll(src, -s, axis=1)
                conds = []
                if dh < 0:
                    conds.append(ridx >= -dil * dh)
                if dh > 0:
                    conds.append(ridx <= dil * (H // dil - 1 - dh) + (dil - 1))
                if dw < 0:
                    conds.append(cidx >= -dil * dw)
                if dw > 0:
                    conds.append(cidx <= dil * (W // dil - 1 - dw) + (dil - 1))
                if conds:
                    cond = conds[0]
                    for c in conds[1:]:
                        cond = cond & c
                    v = jnp.where(cond, v, 0.0)
                r0 = (t_base + t) * Cin
                im_ref[r0:r0 + Cin, :] = v

        emit(0, xf, 1)     # full-res 3x3 taps (+ folded double-scale branch)
        emit(9, x1f, 2)    # half-scale branch as dilation-2 conv on x1_full

        # ---- single MXU matmul: (Cout, K) x (K, L), K = 18 * Cin
        acc = jnp.dot(w_ref[...], im_ref[...],
                      preferred_element_type=jnp.float32)
        acc = acc + b_ref[...]                               # 3 * bias total
        o_ref[0] = acc.astype(o_ref.dtype)

    return kernel


# ----------------------------------------------------------------------------
# Wrapper: NCHW in / NCHW out (PyTorch convention).
# ----------------------------------------------------------------------------
def multi_scale_block(x_nchw, w_hwio, b):
    N, Cin, H, W = x_nchw.shape
    kh, kw, w_cin, Cout = w_hwio.shape
    assert (kh, kw, w_cin) == (3, 3, Cin)
    assert H % 2 == 0 and W % 2 == 0, "even spatial dims expected (scale 0.5)"
    HW = H * W
    dtype = x_nchw.dtype

    # Images per grid step: widen the lane axis (>=512 lanes when possible) to
    # amortize per-step overhead / fill the MXU result width, but keep >= 2
    # grid steps when the batch allows it so both v7x TensorCores get work.
    nb = min(N, max(1, 512 // HW))
    while N % nb:
        nb -= 1
    if N >= 2 and N // nb < 2:
        nb = max(d for d in range(1, N // 2 + 1) if N % d == 0)
    nblk = N // nb
    L = nb * HW

    # lane-dense layout: (nblk, Cin, nb*HW), images concatenated along lanes
    x_blk = (x_nchw.reshape(nblk, nb, Cin, HW)
             .transpose(0, 2, 1, 3)
             .reshape(nblk, Cin, L))

    # ---- fused weight slab (Cout, 18*Cin) ----
    w_oi = jnp.transpose(w_hwio, (3, 2, 0, 1)).astype(jnp.float32)  # (Cout,Cin,3,3)
    # Double-scale branch: conv3x3(nearest_up2(x)) sampled at even positions is
    # exactly a 2x2 conv on x with row/col-summed weights; its 4 taps share the
    # same border masks as the full-res taps, so fold them into those taps.
    fold = {
        (-1, -1): w_oi[:, :, 0, 0],
        (-1, 0):  w_oi[:, :, 0, 1] + w_oi[:, :, 0, 2],
        (0, -1):  w_oi[:, :, 1, 0] + w_oi[:, :, 2, 0],
        (0, 0):   w_oi[:, :, 1, 1] + w_oi[:, :, 1, 2]
                + w_oi[:, :, 2, 1] + w_oi[:, :, 2, 2],
    }
    full_mats = [w_oi[:, :, dh + 1, dw + 1] + fold.get((dh, dw), 0.0)
                 for (dh, dw) in _TAPS]
    dil_mats = [w_oi[:, :, dh + 1, dw + 1] for (dh, dw) in _TAPS]
    wcat = jnp.concatenate(full_mats + dil_mats, axis=1)      # (Cout, 18*Cin)
    b3 = (3.0 * b.astype(jnp.float32)).reshape(Cout, 1)       # one bias / branch

    K = 2 * 9 * Cin
    kernel = _make_kernel(H, W, Cin, Cout, nb)

    out_blk = pl.pallas_call(
        kernel,
        out_shape=jax.ShapeDtypeStruct((nblk, Cout, L), dtype),
        grid=(nblk,),
        in_specs=[
            pl.BlockSpec((1, Cin, L), lambda n: (n, 0, 0)),
            pl.BlockSpec((Cout, K), lambda n: (0, 0)),
            pl.BlockSpec((Cout, 1), lambda n: (0, 0)),
        ],
        out_specs=pl.BlockSpec((1, Cout, L), lambda n: (n, 0, 0)),
        scratch_shapes=[pltpu.VMEM((K, L), jnp.float32)],
        compiler_params=pltpu.CompilerParams(
            dimension_semantics=("parallel",)),
    )(x_blk, wcat, b3)

    return (out_blk.reshape(nblk, Cout, nb, HW)
            .transpose(0, 2, 1, 3)
            .reshape(N, Cout, H, W))


# ----------------------------------------------------------------------------
# Pure-JAX reference (mirrors the PyTorch module with a Conv2d submodule).
# ----------------------------------------------------------------------------
def reference(x_nchw, w_hwio, b):
    w_oihw = jnp.transpose(w_hwio, (3, 2, 0, 1))

    def conv(x):
        y = jax.lax.conv_general_dilated(
            x, w_oihw, window_strides=(1, 1), padding=((1, 1), (1, 1)),
            dimension_numbers=("NCHW", "OIHW", "NCHW"),
            precision=jax.lax.Precision.HIGHEST)
        return y + b.reshape(1, -1, 1, 1)

    x1 = x_nchw[:, :, ::2, ::2]                                  # nearest 0.5x
    x2 = jnp.repeat(jnp.repeat(x_nchw, 2, axis=2), 2, axis=3)    # nearest 2x
    y0 = conv(x_nchw)
    y1 = conv(x1)
    y2 = conv(x2)
    y1_up = jnp.repeat(jnp.repeat(y1, 2, axis=2), 2, axis=3)     # back to (H, W)
    y2_dn = y2[:, :, ::2, ::2]
    return y0 + y1_up + y2_dn


if __name__ == "__main__":
    key = jax.random.PRNGKey(0)
    kx, kw, kb = jax.random.split(key, 3)

    N, C, H, W = 4, 4, 16, 16
    x = jax.random.normal(kx, (N, C, H, W), dtype=jnp.float32)

    # Conv2d(C, C, 3, padding=1) parameters, HWIO layout.
    fan_in = C * 3 * 3
    bound = 1.0 / np.sqrt(fan_in)
    w = jax.random.uniform(kw, (3, 3, C, C), jnp.float32, -bound, bound)
    b = jax.random.uniform(kb, (C,), jnp.float32, -bound, bound)

    out = multi_scale_block(x, w, b)
    out = jax.block_until_ready(out)

    ref = reference(x, w, b)
    np.testing.assert_allclose(np.asarray(out), np.asarray(ref),
                               rtol=1e-3, atol=1e-3)
    print("KERNEL_OK")
</pallas_src>

<mosaic_0001>
module attributes {stable_mosaic.version = 11 : i64} {
  func.func @kernel(%arg0: i32, %arg1: memref<1x4x512xf32, #tpu.memory_space<vmem>>, %arg2: memref<4x72xf32, #tpu.memory_space<vmem>>, %arg3: memref<4x1xf32, #tpu.memory_space<vmem>>, %arg4: memref<1x4x512xf32, #tpu.memory_space<vmem>>, %arg5: memref<72x512xf32, #tpu.memory_space<vmem>>) attributes {dimension_semantics = [#tpu.dimension_semantics<parallel>], iteration_bounds = array<i64: 2>, scalar_prefetch = 0 : i64, scratch_operands = 1 : i64, tpu.core_type = #tpu.core_type<tc>, window_params = [{transform_indices = @transform_0, window_bounds = array<i64: 1, 4, 512>}, {pipeline_mode = #tpu.pipeline_mode<synchronous>, transform_indices = @transform_1, window_bounds = array<i64: 4, 72>}, {pipeline_mode = #tpu.pipeline_mode<synchronous>, transform_indices = @transform_2, window_bounds = array<i64: 4, 1>}, {transform_indices = @transform_3, window_bounds = array<i64: 1, 4, 512>}]} {
    %c0 = arith.constant 0 : index
    %c0_0 = arith.constant 0 : index
    %c0_1 = arith.constant 0 : index
    %0 = vector.load %arg1[%c0, %c0_0, %c0_1] : memref<1x4x512xf32, #tpu.memory_space<vmem>>, vector<1x4x512xf32>
    %1 = vector.shape_cast %0 : vector<1x4x512xf32> to vector<4x512xf32>
    %2 = tpu.iota {dimensions = array<i32: 1>} : vector<1x512xi32>
    %c15_i32 = arith.constant 15 : i32
    %3 = vector.broadcast %c15_i32 : i32 to vector<1x512xi32>
    %4 = arith.andi %2, %3 : vector<1x512xi32>
    %c4_i32 = arith.constant 4 : i32
    %5 = vector.broadcast %c4_i32 : i32 to vector<1x512xi32>
    %6 = arith.shrsi %2, %5 : vector<1x512xi32>
    %c15_i32_2 = arith.constant 15 : i32
    %7 = vector.broadcast %c15_i32_2 : i32 to vector<1x512xi32>
    %8 = arith.andi %6, %7 : vector<1x512xi32>
    %c1_i32 = arith.constant 1 : i32
    %9 = vector.broadcast %c1_i32 : i32 to vector<1x512xi32>
    %10 = arith.andi %8, %9 : vector<1x512xi32>
    %c1_i32_3 = arith.constant 1 : i32
    %11 = vector.broadcast %c1_i32_3 : i32 to vector<1x512xi32>
    %12 = arith.andi %4, %11 : vector<1x512xi32>
    %c0_i32 = arith.constant 0 : i32
    %13 = vector.broadcast %c0_i32 : i32 to vector<1x512xi32>
    %14 = arith.cmpi eq, %10, %13 : vector<1x512xi32>
    %c1_i32_4 = arith.constant 1 : i32
    %15 = vector.broadcast %c1_i32_4 : i32 to vector<1x512xi32>
    %16 = arith.cmpi eq, %12, %15 : vector<1x512xi32>
    %17 = arith.andi %14, %16 : vector<1x512xi1>
    %18 = vector.extract_strided_slice %1 {offsets = [0, 511], sizes = [4, 1], strides = [1, 1]} : vector<4x512xf32> to vector<4x1xf32>
    %19 = vector.extract_strided_slice %1 {offsets = [0, 0], sizes = [4, 511], strides = [1, 1]} : vector<4x512xf32> to vector<4x511xf32>
    %20 = tpu.concatenate %18, %19 in 1 : vector<4x1xf32>, vector<4x511xf32> -> vector<4x512xf32>
    %21 = vector.shape_cast %17 : vector<1x512xi1> to vector<1x512xi1>
    %22 = vector.broadcast %21 : vector<1x512xi1> to vector<4x512xi1>
    %23 = arith.select %22, %20, %1 : vector<4x512xi1>, vector<4x512xf32>
    %c1_i32_5 = arith.constant 1 : i32
    %24 = vector.broadcast %c1_i32_5 : i32 to vector<1x512xi32>
    %25 = arith.cmpi eq, %10, %24 : vector<1x512xi32>
    %c0_i32_6 = arith.constant 0 : i32
    %26 = vector.broadcast %c0_i32_6 : i32 to vector<1x512xi32>
    %27 = arith.cmpi eq, %12, %26 : vector<1x512xi32>
    %28 = arith.andi %25, %27 : vector<1x512xi1>
    %29 = vector.extract_strided_slice %1 {offsets = [0, 496], sizes = [4, 16], strides = [1, 1]} : vector<4x512xf32> to vector<4x16xf32>
    %30 = vector.extract_strided_slice %1 {offsets = [0, 0], sizes = [4, 496], strides = [1, 1]} : vector<4x512xf32> to vector<4x496xf32>
    %31 = tpu.concatenate %29, %30 in 1 : vector<4x16xf32>, vector<4x496xf32> -> vector<4x512xf32>
    %32 = vector.shape_cast %28 : vector<1x512xi1> to vector<1x512xi1>
    %33 = vector.broadcast %32 : vector<1x512xi1> to vector<4x512xi1>
    %34 = arith.select %33, %31, %23 : vector<4x512xi1>, vector<4x512xf32>
    %c1_i32_7 = arith.constant 1 : i32
    %35 = vector.broadcast %c1_i32_7 : i32 to vector<1x512xi32>
    %36 = arith.cmpi eq, %10, %35 : vector<1x512xi32>
    %c1_i32_8 = arith.constant 1 : i32
    %37 = vector.broadcast %c1_i32_8 : i32 to vector<1x512xi32>
    %38 = arith.cmpi eq, %12, %37 : vector<1x512xi32>
    %39 = arith.andi %36, %38 : vector<1x512xi1>
    %40 = vector.extract_strided_slice %1 {offsets = [0, 495], sizes = [4, 17], strides = [1, 1]} : vector<4x512xf32> to vector<4x17xf32>
    %41 = vector.extract_strided_slice %1 {offsets = [0, 0], sizes = [4, 495], strides = [1, 1]} : vector<4x512xf32> to vector<4x495xf32>
    %42 = tpu.concatenate %40, %41 in 1 : vector<4x17xf32>, vector<4x495xf32> -> vector<4x512xf32>
    %43 = vector.shape_cast %39 : vector<1x512xi1> to vector<1x512xi1>
    %44 = vector.broadcast %43 : vector<1x512xi1> to vector<4x512xi1>
    %45 = arith.select %44, %42, %34 : vector<4x512xi1>, vector<4x512xf32>
    %46 = vector.extract_strided_slice %1 {offsets = [0, 495], sizes = [4, 17], strides = [1, 1]} : vector<4x512xf32> to vector<4x17xf32>
    %47 = vector.extract_strided_slice %1 {offsets = [0, 0], sizes = [4, 495], strides = [1, 1]} : vector<4x512xf32> to vector<4x495xf32>
    %48 = tpu.concatenate %46, %47 in 1 : vector<4x17xf32>, vector<4x495xf32> -> vector<4x512xf32>
    %c1_i32_9 = arith.constant 1 : i32
    %49 = vector.broadcast %c1_i32_9 : i32 to vector<1x512xi32>
    %50 = arith.cmpi sge, %8, %49 : vector<1x512xi32>
    %c1_i32_10 = arith.constant 1 : i32
    %51 = vector.broadcast %c1_i32_10 : i32 to vector<1x512xi32>
    %52 = arith.cmpi sge, %4, %51 : vector<1x512xi32>
    %53 = arith.andi %50, %52 : vector<1x512xi1>
    %cst = arith.constant 0.000000e+00 : f32
    %54 = vector.shape_cast %53 : vector<1x512xi1> to vector<1x512xi1>
    %55 = vector.broadcast %54 : vector<1x512xi1> to vector<4x512xi1>
    %56 = vector.broadcast %cst : f32 to vector<4x512xf32>
    %57 = arith.select %55, %48, %56 : vector<4x512xi1>, vector<4x512xf32>
    %c0_11 = arith.constant 0 : index
    %c0_12 = arith.constant 0 : index
    %58 = vector.load %arg5[%c0_11, %c0_12] : memref<72x512xf32, #tpu.memory_space<vmem>>, vector<4x512xf32>
    tpu.vector_store %arg5[%c0_11, %c0_12], %57 {strides = array<i32>} : memref<72x512xf32, #tpu.memory_space<vmem>>, vector<4x512xf32>,
    %59 = vector.extract_strided_slice %1 {offsets = [0, 496], sizes = [4, 16], strides = [1, 1]} : vector<4x512xf32> to vector<4x16xf32>
    %60 = vector.extract_strided_slice %1 {offsets = [0, 0], sizes = [4, 496], strides = [1, 1]} : vector<4x512xf32> to vector<4x496xf32>
    %61 = tpu.concatenate %59, %60 in 1 : vector<4x16xf32>, vector<4x496xf32> -> vector<4x512xf32>
    %c1_i32_13 = arith.constant 1 : i32
    %62 = vector.broadcast %c1_i32_13 : i32 to vector<1x512xi32>
    %63 = arith.cmpi sge, %8, %62 : vector<1x512xi32>
    %cst_14 = arith.constant 0.000000e+00 : f32
    %64 = vector.shape_cast %63 : vector<1x512xi1> to vector<1x512xi1>
    %65 = vector.broadcast %64 : vector<1x512xi1> to vector<4x512xi1>
    %66 = vector.broadcast %cst_14 : f32 to vector<4x512xf32>
    %67 = arith.select %65, %61, %66 : vector<4x512xi1>, vector<4x512xf32>
    %c4 = arith.constant 4 : index
    %c0_15 = arith.constant 0 : index
    %68 = vector.load %arg5[%c4, %c0_15] : memref<72x512xf32, #tpu.memory_space<vmem>>, vector<4x512xf32>
    tpu.vector_store %arg5[%c4, %c0_15], %67 {strides = array<i32>} : memref<72x512xf32, #tpu.memory_space<vmem>>, vector<4x512xf32>,
    %69 = vector.extract_strided_slice %1 {offsets = [0, 497], sizes = [4, 15], strides = [1, 1]} : vector<4x512xf32> to vector<4x15xf32>
    %70 = vector.extract_strided_slice %1 {offsets = [0, 0], sizes = [4, 497], strides = [1, 1]} : vector<4x512xf32> to vector<4x497xf32>
    %71 = tpu.concatenate %69, %70 in 1 : vector<4x15xf32>, vector<4x497xf32> -> vector<4x512xf32>
    %c1_i32_16 = arith.constant 1 : i32
    %72 = vector.broadcast %c1_i32_16 : i32 to vector<1x512xi32>
    %73 = arith.cmpi sge, %8, %72 : vector<1x512xi32>
    %c14_i32 = arith.constant 14 : i32
    %74 = vector.broadcast %c14_i32 : i32 to vector<1x512xi32>
    %75 = arith.cmpi sle, %4, %74 : vector<1x512xi32>
    %76 = arith.andi %73, %75 : vector<1x512xi1>
    %cst_17 = arith.constant 0.000000e+00 : f32
    %77 = vector.shape_cast %76 : vector<1x512xi1> to vector<1x512xi1>
    %78 = vector.broadcast %77 : vector<1x512xi1> to vector<4x512xi1>
    %79 = vector.broadcast %cst_17 : f32 to vector<4x512xf32>
    %80 = arith.select %78, %71, %79 : vector<4x512xi1>, vector<4x512xf32>
    %c8 = arith.constant 8 : index
    %c0_18 = arith.constant 0 : index
    %81 = vector.load %arg5[%c8, %c0_18] : memref<72x512xf32, #tpu.memory_space<vmem>>, vector<4x512xf32>
    tpu.vector_store %arg5[%c8, %c0_18], %80 {strides = array<i32>} : memref<72x512xf32, #tpu.memory_space<vmem>>, vector<4x512xf32>,
    %82 = vector.extract_strided_slice %1 {offsets = [0, 511], sizes = [4, 1], strides = [1, 1]} : vector<4x512xf32> to vector<4x1xf32>
    %83 = vector.extract_strided_slice %1 {offsets = [0, 0], sizes = [4, 511], strides = [1, 1]} : vector<4x512xf32> to vector<4x511xf32>
    %84 = tpu.concatenate %82, %83 in 1 : vector<4x1xf32>, vector<4x511xf32> -> vector<4x512xf32>
    %c1_i32_19 = arith.constant 1 : i32
    %85 = vector.broadcast %c1_i32_19 : i32 to vector<1x512xi32>
    %86 = arith.cmpi sge, %4, %85 : vector<1x512xi32>
    %cst_20 = arith.constant 0.000000e+00 : f32
    %87 = vector.shape_cast %86 : vector<1x512xi1> to vector<1x512xi1>
    %88 = vector.broadcast %87 : vector<1x512xi1> to vector<4x512xi1>
    %89 = vector.broadcast %cst_20 : f32 to vector<4x512xf32>
    %90 = arith.select %88, %84, %89 : vector<4x512xi1>, vector<4x512xf32>
    %c12 = arith.constant 12 : index
    %c0_21 = arith.constant 0 : index
    %91 = vector.load %arg5[%c12, %c0_21] : memref<72x512xf32, #tpu.memory_space<vmem>>, vector<4x512xf32>
    tpu.vector_store %arg5[%c12, %c0_21], %90 {strides = array<i32>} : memref<72x512xf32, #tpu.memory_space<vmem>>, vector<4x512xf32>,
    %c16 = arith.constant 16 : index
    %c0_22 = arith.constant 0 : index
    %92 = vector.load %arg5[%c16, %c0_22] : memref<72x512xf32, #tpu.memory_space<vmem>>, vector<4x512xf32>
    tpu.vector_store %arg5[%c16, %c0_22], %1 {strides = array<i32>} : memref<72x512xf32, #tpu.memory_space<vmem>>, vector<4x512xf32>,
    %93 = vector.extract_strided_slice %1 {offsets = [0, 1], sizes = [4, 511], strides = [1, 1]} : vector<4x512xf32> to vector<4x511xf32>
    %94 = vector.extract_strided_slice %1 {offsets = [0, 0], sizes = [4, 1], strides = [1, 1]} : vector<4x512xf32> to vector<4x1xf32>
    %95 = tpu.concatenate %93, %94 in 1 : vector<4x511xf32>, vector<4x1xf32> -> vector<4x512xf32>
    %c14_i32_23 = arith.constant 14 : i32
    %96 = vector.broadcast %c14_i32_23 : i32 to vector<1x512xi32>
    %97 = arith.cmpi sle, %4, %96 : vector<1x512xi32>
    %cst_24 = arith.constant 0.000000e+00 : f32
    %98 = vector.shape_cast %97 : vector<1x512xi1> to vector<1x512xi1>
    %99 = vector.broadcast %98 : vector<1x512xi1> to vector<4x512xi1>
    %100 = vector.broadcast %cst_24 : f32 to vector<4x512xf32>
    %101 = arith.select %99, %95, %100 : vector<4x512xi1>, vector<4x512xf32>
    %c20 = arith.constant 20 : index
    %c0_25 = arith.constant 0 : index
    %102 = vector.load %arg5[%c20, %c0_25] : memref<72x512xf32, #tpu.memory_space<vmem>>, vector<4x512xf32>
    tpu.vector_store %arg5[%c20, %c0_25], %101 {strides = array<i32>} : memref<72x512xf32, #tpu.memory_space<vmem>>, vector<4x512xf32>,
    %103 = vector.extract_strided_slice %1 {offsets = [0, 15], sizes = [4, 497], strides = [1, 1]} : vector<4x512xf32> to vector<4x497xf32>
    %104 = vector.extract_strided_slice %1 {offsets = [0, 0], sizes = [4, 15], strides = [1, 1]} : vector<4x512xf32> to vector<4x15xf32>
    %105 = tpu.concatenate %103, %104 in 1 : vector<4x497xf32>, vector<4x15xf32> -> vector<4x512xf32>
    %c14_i32_26 = arith.constant 14 : i32
    %106 = vector.broadcast %c14_i32_26 : i32 to vector<1x512xi32>
    %107 = arith.cmpi sle, %8, %106 : vector<1x512xi32>
    %c1_i32_27 = arith.constant 1 : i32
    %108 = vector.broadcast %c1_i32_27 : i32 to vector<1x512xi32>
    %109 = arith.cmpi sge, %4, %108 : vector<1x512xi32>
    %110 = arith.andi %107, %109 : vector<1x512xi1>
    %cst_28 = arith.constant 0.000000e+00 : f32
    %111 = vector.shape_cast %110 : vector<1x512xi1> to vector<1x512xi1>
    %112 = vector.broadcast %111 : vector<1x512xi1> to vector<4x512xi1>
    %113 = vector.broadcast %cst_28 : f32 to vector<4x512xf32>
    %114 = arith.select %112, %105, %113 : vector<4x512xi1>, vector<4x512xf32>
    %c24 = arith.constant 24 : index
    %c0_29 = arith.constant 0 : index
    %115 = vector.load %arg5[%c24, %c0_29] : memref<72x512xf32, #tpu.memory_space<vmem>>, vector<4x512xf32>
    tpu.vector_store %arg5[%c24, %c0_29], %114 {strides = array<i32>} : memref<72x512xf32, #tpu.memory_space<vmem>>, vector<4x512xf32>,
    %116 = vector.extract_strided_slice %1 {offsets = [0, 16], sizes = [4, 496], strides = [1, 1]} : vector<4x512xf32> to vector<4x496xf32>
    %117 = vector.extract_strided_slice %1 {offsets = [0, 0], sizes = [4, 16], strides = [1, 1]} : vector<4x512xf32> to vector<4x16xf32>
    %118 = tpu.concatenate %116, %117 in 1 : vector<4x496xf32>, vector<4x16xf32> -> vector<4x512xf32>
    %c14_i32_30 = arith.constant 14 : i32
    %119 = vector.broadcast %c14_i32_30 : i32 to vector<1x512xi32>
    %120 = arith.cmpi sle, %8, %119 : vector<1x512xi32>
    %cst_31 = arith.constant 0.000000e+00 : f32
    %121 = vector.shape_cast %120 : vector<1x512xi1> to vector<1x512xi1>
    %122 = vector.broadcast %121 : vector<1x512xi1> to vector<4x512xi1>
    %123 = vector.broadcast %cst_31 : f32 to vector<4x512xf32>
    %124 = arith.select %122, %118, %123 : vector<4x512xi1>, vector<4x512xf32>
    %c28 = arith.constant 28 : index
    %c0_32 = arith.constant 0 : index
    %125 = vector.load %arg5[%c28, %c0_32] : memref<72x512xf32, #tpu.memory_space<vmem>>, vector<4x512xf32>
    tpu.vector_store %arg5[%c28, %c0_32], %124 {strides = array<i32>} : memref<72x512xf32, #tpu.memory_space<vmem>>, vector<4x512xf32>,
    %126 = vector.extract_strided_slice %1 {offsets = [0, 17], sizes = [4, 495], strides = [1, 1]} : vector<4x512xf32> to vector<4x495xf32>
    %127 = vector.extract_strided_slice %1 {offsets = [0, 0], sizes = [4, 17], strides = [1, 1]} : vector<4x512xf32> to vector<4x17xf32>
    %128 = tpu.concatenate %126, %127 in 1 : vector<4x495xf32>, vector<4x17xf32> -> vector<4x512xf32>
    %c14_i32_33 = arith.constant 14 : i32
    %129 = vector.broadcast %c14_i32_33 : i32 to vector<1x512xi32>
    %130 = arith.cmpi sle, %8, %129 : vector<1x512xi32>
    %c14_i32_34 = arith.constant 14 : i32
    %131 = vector.broadcast %c14_i32_34 : i32 to vector<1x512xi32>
    %132 = arith.cmpi sle, %4, %131 : vector<1x512xi32>
    %133 = arith.andi %130, %132 : vector<1x512xi1>
    %cst_35 = arith.constant 0.000000e+00 : f32
    %134 = vector.shape_cast %133 : vector<1x512xi1> to vector<1x512xi1>
    %135 = vector.broadcast %134 : vector<1x512xi1> to vector<4x512xi1>
    %136 = vector.broadcast %cst_35 : f32 to vector<4x512xf32>
    %137 = arith.select %135, %128, %136 : vector<4x512xi1>, vector<4x512xf32>
    %c32 = arith.constant 32 : index
    %c0_36 = arith.constant 0 : index
    %138 = vector.load %arg5[%c32, %c0_36] : memref<72x512xf32, #tpu.memory_space<vmem>>, vector<4x512xf32>
    tpu.vector_store %arg5[%c32, %c0_36], %137 {strides = array<i32>} : memref<72x512xf32, #tpu.memory_space<vmem>>, vector<4x512xf32>,
    %139 = vector.extract_strided_slice %45 {offsets = [0, 478], sizes = [4, 34], strides = [1, 1]} : vector<4x512xf32> to vector<4x34xf32>
    %140 = vector.extract_strided_slice %45 {offsets = [0, 0], sizes = [4, 478], strides = [1, 1]} : vector<4x512xf32> to vector<4x478xf32>
    %141 = tpu.concatenate %139, %140 in 1 : vector<4x34xf32>, vector<4x478xf32> -> vector<4x512xf32>
    %c2_i32 = arith.constant 2 : i32
    %142 = vector.broadcast %c2_i32 : i32 to vector<1x512xi32>
    %143 = arith.cmpi sge, %8, %142 : vector<1x512xi32>
    %c2_i32_37 = arith.constant 2 : i32
    %144 = vector.broadcast %c2_i32_37 : i32 to vector<1x512xi32>
    %145 = arith.cmpi sge, %4, %144 : vector<1x512xi32>
    %146 = arith.andi %143, %145 : vector<1x512xi1>
    %cst_38 = arith.constant 0.000000e+00 : f32
    %147 = vector.shape_cast %146 : vector<1x512xi1> to vector<1x512xi1>
    %148 = vector.broadcast %147 : vector<1x512xi1> to vector<4x512xi1>
    %149 = vector.broadcast %cst_38 : f32 to vector<4x512xf32>
    %150 = arith.select %148, %141, %149 : vector<4x512xi1>, vector<4x512xf32>
    %c36 = arith.constant 36 : index
    %c0_39 = arith.constant 0 : index
    %151 = vector.load %arg5[%c36, %c0_39] : memref<72x512xf32, #tpu.memory_space<vmem>>, vector<4x512xf32>
    tpu.vector_store %arg5[%c36, %c0_39], %150 {strides = array<i32>} : memref<72x512xf32, #tpu.memory_space<vmem>>, vector<4x512xf32>,
    %152 = vector.extract_strided_slice %45 {offsets = [0, 480], sizes = [4, 32], strides = [1, 1]} : vector<4x512xf32> to vector<4x32xf32>
    %153 = vector.extract_strided_slice %45 {offsets = [0, 0], sizes = [4, 480], strides = [1, 1]} : vector<4x512xf32> to vector<4x480xf32>
    %154 = tpu.concatenate %152, %153 in 1 : vector<4x32xf32>, vector<4x480xf32> -> vector<4x512xf32>
    %c2_i32_40 = arith.constant 2 : i32
    %155 = vector.broadcast %c2_i32_40 : i32 to vector<1x512xi32>
    %156 = arith.cmpi sge, %8, %155 : vector<1x512xi32>
    %cst_41 = arith.constant 0.000000e+00 : f32
    %157 = vector.shape_cast %156 : vector<1x512xi1> to vector<1x512xi1>
    %158 = vector.broadcast %157 : vector<1x512xi1> to vector<4x512xi1>
    %159 = vector.broadcast %cst_41 : f32 to vector<4x512xf32>
    %160 = arith.select %158, %154, %159 : vector<4x512xi1>, vector<4x512xf32>
    %c40 = arith.constant 40 : index
    %c0_42 = arith.constant 0 : index
    %161 = vector.load %arg5[%c40, %c0_42] : memref<72x512xf32, #tpu.memory_space<vmem>>, vector<4x512xf32>
    tpu.vector_store %arg5[%c40, %c0_42], %160 {strides = array<i32>} : memref<72x512xf32, #tpu.memory_space<vmem>>, vector<4x512xf32>,
    %162 = vector.extract_strided_slice %45 {offsets = [0, 482], sizes = [4, 30], strides = [1, 1]} : vector<4x512xf32> to vector<4x30xf32>
    %163 = vector.extract_strided_slice %45 {offsets = [0, 0], sizes = [4, 482], strides = [1, 1]} : vector<4x512xf32> to vector<4x482xf32>
    %164 = tpu.concatenate %162, %163 in 1 : vector<4x30xf32>, vector<4x482xf32> -> vector<4x512xf32>
    %c2_i32_43 = arith.constant 2 : i32
    %165 = vector.broadcast %c2_i32_43 : i32 to vector<1x512xi32>
    %166 = arith.cmpi sge, %8, %165 : vector<1x512xi32>
    %c13_i32 = arith.constant 13 : i32
    %167 = vector.broadcast %c13_i32 : i32 to vector<1x512xi32>
    %168 = arith.cmpi sle, %4, %167 : vector<1x512xi32>
    %169 = arith.andi %166, %168 : vector<1x512xi1>
    %cst_44 = arith.constant 0.000000e+00 : f32
    %170 = vector.shape_cast %169 : vector<1x512xi1> to vector<1x512xi1>
    %171 = vector.broadcast %170 : vector<1x512xi1> to vector<4x512xi1>
    %172 = vector.broadcast %cst_44 : f32 to vector<4x512xf32>
    %173 = arith.select %171, %164, %172 : vector<4x512xi1>, vector<4x512xf32>
    %c44 = arith.constant 44 : index
    %c0_45 = arith.constant 0 : index
    %174 = vector.load %arg5[%c44, %c0_45] : memref<72x512xf32, #tpu.memory_space<vmem>>, vector<4x512xf32>
    tpu.vector_store %arg5[%c44, %c0_45], %173 {strides = array<i32>} : memref<72x512xf32, #tpu.memory_space<vmem>>, vector<4x512xf32>,
    %175 = vector.extract_strided_slice %45 {offsets = [0, 510], sizes = [4, 2], strides = [1, 1]} : vector<4x512xf32> to vector<4x2xf32>
    %176 = vector.extract_strided_slice %45 {offsets = [0, 0], sizes = [4, 510], strides = [1, 1]} : vector<4x512xf32> to vector<4x510xf32>
    %177 = tpu.concatenate %175, %176 in 1 : vector<4x2xf32>, vector<4x510xf32> -> vector<4x512xf32>
    %c2_i32_46 = arith.constant 2 : i32
    %178 = vector.broadcast %c2_i32_46 : i32 to vector<1x512xi32>
    %179 = arith.cmpi sge, %4, %178 : vector<1x512xi32>
    %cst_47 = arith.constant 0.000000e+00 : f32
    %180 = vector.shape_cast %179 : vector<1x512xi1> to vector<1x512xi1>
    %181 = vector.broadcast %180 : vector<1x512xi1> to vector<4x512xi1>
    %182 = vector.broadcast %cst_47 : f32 to vector<4x512xf32>
    %183 = arith.select %181, %177, %182 : vector<4x512xi1>, vector<4x512xf32>
    %c48 = arith.constant 48 : index
    %c0_48 = arith.constant 0 : index
    %184 = vector.load %arg5[%c48, %c0_48] : memref<72x512xf32, #tpu.memory_space<vmem>>, vector<4x512xf32>
    tpu.vector_store %arg5[%c48, %c0_48], %183 {strides = array<i32>} : memref<72x512xf32, #tpu.memory_space<vmem>>, vector<4x512xf32>,
    %c52 = arith.constant 52 : index
    %c0_49 = arith.constant 0 : index
    %185 = vector.load %arg5[%c52, %c0_49] : memref<72x512xf32, #tpu.memory_space<vmem>>, vector<4x512xf32>
    tpu.vector_store %arg5[%c52, %c0_49], %45 {strides = array<i32>} : memref<72x512xf32, #tpu.memory_space<vmem>>, vector<4x512xf32>,
    %186 = vector.extract_strided_slice %45 {offsets = [0, 2], sizes = [4, 510], strides = [1, 1]} : vector<4x512xf32> to vector<4x510xf32>
    %187 = vector.extract_strided_slice %45 {offsets = [0, 0], sizes = [4, 2], strides = [1, 1]} : vector<4x512xf32> to vector<4x2xf32>
    %188 = tpu.concatenate %186, %187 in 1 : vector<4x510xf32>, vector<4x2xf32> -> vector<4x512xf32>
    %c13_i32_50 = arith.constant 13 : i32
    %189 = vector.broadcast %c13_i32_50 : i32 to vector<1x512xi32>
    %190 = arith.cmpi sle, %4, %189 : vector<1x512xi32>
    %cst_51 = arith.constant 0.000000e+00 : f32
    %191 = vector.shape_cast %190 : vector<1x512xi1> to vector<1x512xi1>
    %192 = vector.broadcast %191 : vector<1x512xi1> to vector<4x512xi1>
    %193 = vector.broadcast %cst_51 : f32 to vector<4x512xf32>
    %194 = arith.select %192, %188, %193 : vector<4x512xi1>, vector<4x512xf32>
    %c56 = arith.constant 56 : index
    %c0_52 = arith.constant 0 : index
    %195 = vector.load %arg5[%c56, %c0_52] : memref<72x512xf32, #tpu.memory_space<vmem>>, vector<4x512xf32>
    tpu.vector_store %arg5[%c56, %c0_52], %194 {strides = array<i32>} : memref<72x512xf32, #tpu.memory_space<vmem>>, vector<4x512xf32>,
    %196 = vector.extract_strided_slice %45 {offsets = [0, 30], sizes = [4, 482], strides = [1, 1]} : vector<4x512xf32> to vector<4x482xf32>
    %197 = vector.extract_strided_slice %45 {offsets = [0, 0], sizes = [4, 30], strides = [1, 1]} : vector<4x512xf32> to vector<4x30xf32>
    %198 = tpu.concatenate %196, %197 in 1 : vector<4x482xf32>, vector<4x30xf32> -> vector<4x512xf32>
    %c13_i32_53 = arith.constant 13 : i32
    %199 = vector.broadcast %c13_i32_53 : i32 to vector<1x512xi32>
    %200 = arith.cmpi sle, %8, %199 : vector<1x512xi32>
    %c2_i32_54 = arith.constant 2 : i32
    %201 = vector.broadcast %c2_i32_54 : i32 to vector<1x512xi32>
    %202 = arith.cmpi sge, %4, %201 : vector<1x512xi32>
    %203 = arith.andi %200, %202 : vector<1x512xi1>
    %cst_55 = arith.constant 0.000000e+00 : f32
    %204 = vector.shape_cast %203 : vector<1x512xi1> to vector<1x512xi1>
    %205 = vector.broadcast %204 : vector<1x512xi1> to vector<4x512xi1>
    %206 = vector.broadcast %cst_55 : f32 to vector<4x512xf32>
    %207 = arith.select %205, %198, %206 : vector<4x512xi1>, vector<4x512xf32>
    %c60 = arith.constant 60 : index
    %c0_56 = arith.constant 0 : index
    %208 = vector.load %arg5[%c60, %c0_56] : memref<72x512xf32, #tpu.memory_space<vmem>>, vector<4x512xf32>
    tpu.vector_store %arg5[%c60, %c0_56], %207 {strides = array<i32>} : memref<72x512xf32, #tpu.memory_space<vmem>>, vector<4x512xf32>,
    %209 = vector.extract_strided_slice %45 {offsets = [0, 32], sizes = [4, 480], strides = [1, 1]} : vector<4x512xf32> to vector<4x480xf32>
    %210 = vector.extract_strided_slice %45 {offsets = [0, 0], sizes = [4, 32], strides = [1, 1]} : vector<4x512xf32> to vector<4x32xf32>
    %211 = tpu.concatenate %209, %210 in 1 : vector<4x480xf32>, vector<4x32xf32> -> vector<4x512xf32>
    %c13_i32_57 = arith.constant 13 : i32
    %212 = vector.broadcast %c13_i32_57 : i32 to vector<1x512xi32>
    %213 = arith.cmpi sle, %8, %212 : vector<1x512xi32>
    %cst_58 = arith.constant 0.000000e+00 : f32
    %214 = vector.shape_cast %213 : vector<1x512xi1> to vector<1x512xi1>
    %215 = vector.broadcast %214 : vector<1x512xi1> to vector<4x512xi1>
    %216 = vector.broadcast %cst_58 : f32 to vector<4x512xf32>
    %217 = arith.select %215, %211, %216 : vector<4x512xi1>, vector<4x512xf32>
    %c64 = arith.constant 64 : index
    %c0_59 = arith.constant 0 : index
    %218 = vector.load %arg5[%c64, %c0_59] : memref<72x512xf32, #tpu.memory_space<vmem>>, vector<4x512xf32>
    tpu.vector_store %arg5[%c64, %c0_59], %217 {strides = array<i32>} : memref<72x512xf32, #tpu.memory_space<vmem>>, vector<4x512xf32>,
    %219 = vector.extract_strided_slice %45 {offsets = [0, 34], sizes = [4, 478], strides = [1, 1]} : vector<4x512xf32> to vector<4x478xf32>
    %220 = vector.extract_strided_slice %45 {offsets = [0, 0], sizes = [4, 34], strides = [1, 1]} : vector<4x512xf32> to vector<4x34xf32>
    %221 = tpu.concatenate %219, %220 in 1 : vector<4x478xf32>, vector<4x34xf32> -> vector<4x512xf32>
    %c13_i32_60 = arith.constant 13 : i32
    %222 = vector.broadcast %c13_i32_60 : i32 to vector<1x512xi32>
    %223 = arith.cmpi sle, %8, %222 : vector<1x512xi32>
    %c13_i32_61 = arith.constant 13 : i32
    %224 = vector.broadcast %c13_i32_61 : i32 to vector<1x512xi32>
    %225 = arith.cmpi sle, %4, %224 : vector<1x512xi32>
    %226 = arith.andi %223, %225 : vector<1x512xi1>
    %cst_62 = arith.constant 0.000000e+00 : f32
    %227 = vector.shape_cast %226 : vector<1x512xi1> to vector<1x512xi1>
    %228 = vector.broadcast %227 : vector<1x512xi1> to vector<4x512xi1>
    %229 = vector.broadcast %cst_62 : f32 to vector<4x512xf32>
    %230 = arith.select %228, %221, %229 : vector<4x512xi1>, vector<4x512xf32>
    %c68 = arith.constant 68 : index
    %c0_63 = arith.constant 0 : index
    %231 = vector.load %arg5[%c68, %c0_63] : memref<72x512xf32, #tpu.memory_space<vmem>>, vector<4x512xf32>
    tpu.vector_store %arg5[%c68, %c0_63], %230 {strides = array<i32>} : memref<72x512xf32, #tpu.memory_space<vmem>>, vector<4x512xf32>,
    %c0_64 = arith.constant 0 : index
    %c0_65 = arith.constant 0 : index
    %232 = vector.load %arg2[%c0_64, %c0_65] : memref<4x72xf32, #tpu.memory_space<vmem>>, vector<4x72xf32>
    %c0_66 = arith.constant 0 : index
    %c0_67 = arith.constant 0 : index
    %233 = vector.load %arg5[%c0_66, %c0_67] : memref<72x512xf32, #tpu.memory_space<vmem>>, vector<72x512xf32>
    %cst_68 = arith.constant dense<0.000000e+00> : vector<4x512xf32>
    %234 = tpu.matmul %232, %233, %cst_68 {dimension_numbers = #tpu.dot_dimension_numbers<[1], [0], [0], [1], [0, 0, 1, 1], [], []>} : vector<4x72xf32>, vector<72x512xf32>, vector<4x512xf32> -> vector<4x512xf32>
    %c0_69 = arith.constant 0 : index
    %c0_70 = arith.constant 0 : index
    %235 = vector.load %arg3[%c0_69, %c0_70] : memref<4x1xf32, #tpu.memory_space<vmem>>, vector<4x1xf32>
    %236 = vector.broadcast %235 : vector<4x1xf32> to vector<4x512xf32>
    %237 = arith.addf %234, %236 : vector<4x512xf32>
    %c0_71 = arith.constant 0 : index
    %c0_72 = arith.constant 0 : index
    %c0_73 = arith.constant 0 : index
    %238 = vector.load %arg4[%c0_71, %c0_72, %c0_73] : memref<1x4x512xf32, #tpu.memory_space<vmem>>, vector<1x4x512xf32>
    %239 = vector.shape_cast %238 : vector<1x4x512xf32> to vector<4x512xf32>
    %240 = vector.shape_cast %237 : vector<4x512xf32> to vector<1x4x512xf32>
    tpu.vector_store %arg4[%c0_71, %c0_72, %c0_73], %240 {strides = array<i32>} : memref<1x4x512xf32, #tpu.memory_space<vmem>>, vector<1x4x512xf32>,
    return
  }
  func.func @transform_0(%arg0: i32) -> (i32, i32, i32) {
    %c0_i32 = arith.constant 0 : i32
    %c0_i32_0 = arith.constant 0 : i32
    %c0_i32_1 = arith.constant 0 : i32
    return %arg0, %c0_i32, %c0_i32_0 : i32, i32, i32
  }
  func.func @transform_1(%arg0: i32) -> (i32, i32) {
    %c0_i32 = arith.constant 0 : i32
    %c0_i32_0 = arith.constant 0 : i32
    %c0_i32_1 = arith.constant 0 : i32
    return %c0_i32, %c0_i32_0 : i32, i32
  }
  func.func @transform_2(%arg0: i32) -> (i32, i32) {
    %c0_i32 = arith.constant 0 : i32
    %c0_i32_0 = arith.constant 0 : i32
    %c0_i32_1 = arith.constant 0 : i32
    return %c0_i32, %c0_i32_0 : i32, i32
  }
  func.func @transform_3(%arg0: i32) -> (i32, i32, i32) {
    %c0_i32 = arith.constant 0 : i32
    %c0_i32_0 = arith.constant 0 : i32
    %c0_i32_1 = arith.constant 0 : i32
    return %arg0, %c0_i32, %c0_i32_0 : i32, i32, i32
  }
}

</mosaic_0001>

<llo_original>
// kernel: tpu_custom_call.1
$region0: #{tpu_custom_call.1}
  #allocation0 [shape = 'u32[]', space=smem, size = 0x4, offset = 0x4, fixed_abs, tag = 'smem constant byte address 0x4 - core index']
  #allocation1 [shape = 'u32[144,128]{1,0:T(1,128)}', space=vmem, size = 0x12000, scoped, tag = 'internal scratch']
  #allocation2 [shape = 'f32[72,512]{1,0:T(8,128)}', space=vmem, size = 0x24000, scoped, tag = 'scratch operand']
  %s0 = inlined_call_operand.hbm [shape: f32[2,4,512], index: 0, kind: input, shape index: {}]
  %s1 = inlined_call_operand.vmem [shape: f32[4,72], index: 1, kind: input, shape index: {}]
  %s2 = inlined_call_operand.vmem [shape: f32[4,1], index: 2, kind: input, shape index: {}]
  %s3 = inlined_call_operand.hbm [shape: f32[2,4,512], index: 3, kind: output, shape index: {}]
  %s4 = sld [smem:[#allocation0]]
  $region49: #{tpu_custom_call.1} parent=0
    _
  %s6 = ssub.s32 1, %s4
  %s7 = scalar_select 0, %s6, %s4
  $region1: #{tpu_custom_call.1} parent=0
    #allocation3 [shape = 'u8[16384]{0}', space=vmem, size = 0x4000, scoped, tag = 'input window, operand 0']
    #allocation4 [shape = 's32[2]{0}', space=sflag, size = 0x8, scoped, tag = 'scoped memory for tpu_custom_call.1']
    #allocation5 [shape = 's32[2]{0}', space=sflag, size = 0x8, scoped, tag = 'scoped memory for tpu_custom_call.1']
    #allocation6 [shape = 'u8[16384]{0}', space=vmem, size = 0x4000, scoped, tag = 'output window, operand 0']
    %8 = vsyncpa [#allocation4], 0
    %s9 = scalar_lea.sflag [#allocation4], 1
    %10 = vsyncpa %s9, 0
    %11 = vsyncpa [#allocation5], 0
    %s12 = scalar_lea.sflag [#allocation5], 1
    %13 = vsyncpa %s12, 0
    loop: start=0, step=1, limit=4
    $region2: #{tpu_custom_call.1} parent=1 // loop_pre_header
      _
    $region3: #{tpu_custom_call.1} parent=1 // loop_header
      %s15 = sphi 0, %s19
      %p16 = scmp.ge.s32.totalorder %s15, 4
      %s25 = sphi 0, %s27
      %s28 = sphi 0, %s25
      %s29 = sphi 0, %s28
      %s45 = sphi 0, %s29
      %s49 = sphi 0, %s49
      %s51 = sphi 0, %s49
      %s52 = sphi 0, %s51
      %s66 = sphi 0, %s52
      %s70 = sphi 0, %s70
      %s72 = sphi 0, %s70
      %s73 = sphi 0, %s72
      %s87 = sphi 0, %s73
      %s93 = sphi 0, %s95
      %s96 = sphi 0, %s93
      %s97 = sphi 0, %s96
      %s113 = sphi 0, %s97
    $region4: #{tpu_custom_call.1} parent=1 // loop_header_branch
      %18 = sbr.rel (%p16) target = $region8
    $region5: #{tpu_custom_call.1} parent=1 // loop_body
      %s20 = ssub.s32 %s15, 1
      %s21 = ssub.s32 %s15, 2
      %s22 = sadd.s32 %s15, 1
      %s23 = ssub.s32 %s15, %s22
      %p24 = scmp.eq.s32.totalorder %s23, 0
      %s26 = sadd.s32 %s25, 1
      %s27 = scalar_select %p24, %s25, %s26
      %p30 = pneg %p24
      %p31 = scmp.eq.s32.totalorder %s15, 1
      %p32 = por %p30, %p31
      %p33 = scmp.ne.s32.totalorder %s25, %s28
      %p34 = scmp.eq.s32.totalorder %s15, 0
      %p35 = por %p33, %p34
      %p36 = scmp.ne.s32.totalorder %s25, %s28
      %p37 = scmp.eq.s32.totalorder %s20, 1
      %p38 = por %p36, %p37
      %p39 = scmp.ne.s32.totalorder %s28, %s29
      %p40 = scmp.eq.s32.totalorder %s20, 0
      %p41 = por %p39, %p40
      %p42 = scmp.ne.s32.totalorder %s28, %s29
      %p43 = scmp.eq.s32.totalorder %s21, 1
      %p44 = por %p42, %p43
      %p46 = scmp.ne.s32.totalorder %s29, %s45
      %p47 = scmp.eq.s32.totalorder %s21, 0
      %p48 = por %p46, %p47
      %s50 = sadd.s32 %s49, 1
      %p53 = scmp.eq.s32.totalorder %s15, 1
      %p54 = scmp.ne.s32.totalorder %s49, %s51
      %p55 = scmp.eq.s32.totalorder %s15, 0
      %p56 = por %p54, %p55
      %p57 = scmp.ne.s32.totalorder %s49, %s51
      %p58 = scmp.eq.s32.totalorder %s20, 1
      %p59 = por %p57, %p58
      %p60 = scmp.ne.s32.totalorder %s51, %s52
      %p61 = scmp.eq.s32.totalorder %s20, 0
      %p62 = por %p60, %p61
      %p63 = scmp.ne.s32.totalorder %s51, %s52
      %p64 = scmp.eq.s32.totalorder %s21, 1
      %p65 = por %p63, %p64
      %p67 = scmp.ne.s32.totalorder %s52, %s66
      %p68 = scmp.eq.s32.totalorder %s21, 0
      %p69 = por %p67, %p68
      %s71 = sadd.s32 %s70, 1
      %p74 = scmp.eq.s32.totalorder %s15, 1
      %p75 = scmp.ne.s32.totalorder %s70, %s72
      %p76 = scmp.eq.s32.totalorder %s15, 0
      %p77 = por %p75, %p76
      %p78 = scmp.ne.s32.totalorder %s70, %s72
      %p79 = scmp.eq.s32.totalorder %s20, 1
      %p80 = por %p78, %p79
      %p81 = scmp.ne.s32.totalorder %s72, %s73
      %p82 = scmp.eq.s32.totalorder %s20, 0
      %p83 = por %p81, %p82
      %p84 = scmp.ne.s32.totalorder %s72, %s73
      %p85 = scmp.eq.s32.totalorder %s21, 1
      %p86 = por %p84, %p85
      %p88 = scmp.ne.s32.totalorder %s73, %s87
      %p89 = scmp.eq.s32.totalorder %s21, 0
      %p90 = por %p88, %p89
      %s91 = ssub.s32 %s15, %s22
      %p92 = scmp.eq.s32.totalorder %s91, 0
      %s94 = sadd.s32 %s93, 1
      %s95 = scalar_select %p92, %s93, %s94
      %p98 = pneg %p92
      %p99 = scmp.eq.s32.totalorder %s15, 1
      %p100 = por %p98, %p99
      %p101 = scmp.ne.s32.totalorder %s93, %s96
      %p102 = scmp.eq.s32.totalorder %s15, 0
      %p103 = por %p101, %p102
      %p104 = scmp.ne.s32.totalorder %s93, %s96
      %p105 = scmp.eq.s32.totalorder %s20, 1
      %p106 = por %p104, %p105
      %p107 = scmp.ne.s32.totalorder %s96, %s97
      %p108 = scmp.eq.s32.totalorder %s20, 0
      %p109 = por %p107, %p108
      %p110 = scmp.ne.s32.totalorder %s96, %s97
      %p111 = scmp.eq.s32.totalorder %s21, 1
      %p112 = por %p110, %p111
      %p114 = scmp.ne.s32.totalorder %s97, %s113
      %p115 = scmp.eq.s32.totalorder %s21, 0
      %p116 = por %p114, %p115
      %p117 = scmp.le.s32.totalorder 1, %s15
      %p118 = scmp.lt.s32.totalorder %s15, 3
      %p119 = pnand %p117, %p118
      %p120 = pneg %p119
      // Predicated region
      $region9: #{tpu_custom_call.1} parent=5 // pred_check
        _
      $region10: #{tpu_custom_call.1} parent=5 // pred_check_branch
        %122 = sbr.rel (%p119) target = $region12
      $region11: #{tpu_custom_call.1} parent=5 // pred_region
        %s123 = ssub.s32 %s15, 1
        // Predicated region
        $region13: #{tpu_custom_call.1} parent=11 // pred_check
          %p124 = pneg %p62
        $region14: #{tpu_custom_call.1} parent=11 // pred_check_branch
          %126 = sbr.rel (%p124) target = $region16
        $region15: #{tpu_custom_call.1} parent=11 // pred_region
          _
        $region16: #{tpu_custom_call.1} parent=11 // pred_fallthru
          _
        // Predicated region
        $region17: #{tpu_custom_call.1} parent=11 // pred_check
          %p127 = pneg %p83
        $region18: #{tpu_custom_call.1} parent=11 // pred_check_branch
          %129 = sbr.rel (%p127) target = $region20
        $region19: #{tpu_custom_call.1} parent=11 // pred_region
          _
        $region20: #{tpu_custom_call.1} parent=11 // pred_fallthru
          _
      $region12: #{tpu_custom_call.1} parent=5 // pred_fallthru
        _
      %p130 = scmp.lt.s32.totalorder %s15, 2
      // Predicated region
      $region21: #{tpu_custom_call.1} parent=5 // pred_check
        %p131 = pneg %p130
      $region22: #{tpu_custom_call.1} parent=5 // pred_check_branch
        %133 = sbr.rel (%p131) target = $region24
      $region23: #{tpu_custom_call.1} parent=5 // pred_region
        // Predicated region
        $region25: #{tpu_custom_call.1} parent=23 // pred_check
          %p134 = pneg %p35
        $region26: #{tpu_custom_call.1} parent=23 // pred_check_branch
          %136 = sbr.rel (%p134) target = $region28
        $region27: #{tpu_custom_call.1} parent=23 // pred_region
          %s137 = sand.u32 %s25, 1
          %s138 = scalar_lea.sflag [#allocation4], %s137
          %s139 = sand.u32 %s25, 1
          %s140 = smul.addr %s139, 16
          %s141 = scalar_lea.vmem [#allocation3], %s140
          %s143 = ssub.s32 256, 256
          %144 = vsyncadd %s138, %s143
          %s145 = smul.addr %s15, 4
          %s146 = smul.addr %s145, 64
          %s147 = scalar_lea.hbm %s0, %s146
          %s149 = sshll.u32 %s141, 4
          %s150 = int_to_ptr.vmem [resolvable:$true] %s149
          %152 = dma.hbm_to_vmem [thread:$0]  %s147, 256, %s150, %s138
        $region28: #{tpu_custom_call.1} parent=23 // pred_fallthru
          _
      $region24: #{tpu_custom_call.1} parent=5 // pred_fallthru
        _
      %p153 = scmp.le.s32.totalorder 1, %s15
      %p154 = scmp.lt.s32.totalorder %s15, 3
      %p155 = pnand %p153, %p154
      %p156 = pneg %p155
      // Predicated region
      $region29: #{tpu_custom_call.1} parent=5 // pred_check
        _
      $region30: #{tpu_custom_call.1} parent=5 // pred_check_branch
        %158 = sbr.rel (%p155) target = $region32
      $region31: #{tpu_custom_call.1} parent=5 // pred_region
        %s159 = ssub.s32 %s15, 1
        %s160 = sand.u32 %s28, 1
        %s161 = scalar_lea.sflag [#allocation4], %s160
        %s162 = sand.u32 %s28, 1
        %s163 = smul.addr %s162, 16
        %s164 = scalar_lea.vmem [#allocation3], %s163
        // Predicated region
        $region33: #{tpu_custom_call.1} parent=31 // pred_check
          %p165 = pneg %p41
        $region34: #{tpu_custom_call.1} parent=31 // pred_check_branch
          %167 = sbr.rel (%p165) target = $region36
        $region35: #{tpu_custom_call.1} parent=31 // pred_region
          %168 = dma.done %s161, 256
        $region36: #{tpu_custom_call.1} parent=31 // pred_fallthru
          _
        %s169 = sand.u32 %s28, 1
        %s170 = scalar_lea.sflag [#allocation4], %s169
        %s171 = sand.u32 %s28, 1
        %s172 = smul.addr %s171, 16
        %s173 = scalar_lea.vmem [#allocation3], %s172
        %p174 = pneg %p41
        %p175 = pneg %p38
        %p176 = pneg %p62
        %p177 = pneg %p59
        %p178 = pneg %p83
        %p179 = pneg %p80
        %p180 = pneg %p109
        %p181 = pneg %p106
        %s182 = sand.u32 %s96, 1
        %s183 = scalar_lea.sflag [#allocation5], %s182
        %s184 = sand.u32 %s96, 1
        %s185 = smul.addr %s184, 16
        %s186 = scalar_lea.vmem [#allocation6], %s185
        %v187 = vld [vmem:[%s164] sm:$0xff]
        %v188 = vld [vmem:[%s164 + $0x8] sm:$0xff]
        %v189 = vlaneseq
        %v190 = vand.u32 %v189, 127
        %v191 = vadd.s32 %v190, 128
        %v192 = vadd.s32 %v190, 256
        %v193 = vadd.s32 %v190, 384
        %v194 = vand.u32 %v190, 15
        %v195 = vand.u32 %v191, 15
        %v196 = vand.u32 %v192, 15
        %v197 = vand.u32 %v193, 15
        %v198 = vshra.s32 %v190, 4
        %v199 = vshra.s32 %v191, 4
        %v200 = vshra.s32 %v192, 4
        %v201 = vshra.s32 %v193, 4
        %v202 = vand.u32 %v198, 15
        %v203 = vand.u32 %v199, 15
        %v204 = vand.u32 %v200, 15
        %v205 = vand.u32 %v201, 15
        %v206 = vand.u32 %v202, 1
        %v207 = vand.u32 %v203, 1
        %v208 = vand.u32 %v204, 1
        %v209 = vand.u32 %v205, 1
        %v210 = vand.u32 %v194, 1
        %v211 = vand.u32 %v195, 1
        %v212 = vand.u32 %v196, 1
        %v213 = vand.u32 %v197, 1
        %vm214 = vcmp.eq.s32.totalorder %v206, 0
        %vm215 = vcmp.eq.s32.totalorder %v207, 0
        %vm216 = vcmp.eq.s32.totalorder %v208, 0
        %vm217 = vcmp.eq.s32.totalorder %v209, 0
        %vm218 = vcmp.eq.s32.totalorder %v210, 1
        %vm219 = vcmp.eq.s32.totalorder %v211, 1
        %vm220 = vcmp.eq.s32.totalorder %v212, 1
        %vm221 = vcmp.eq.s32.totalorder %v213, 1
        %vm222 = vmand %vm214, %vm218
        %vm223 = vmand %vm215, %vm219
        %vm224 = vmand %vm216, %vm220
        %vm225 = vmand %vm217, %vm221
        %v227 = vcombine.high %v188, %v188
        %228 = vrot.lane.b32.xlu0 %v227, 1
        %v229 = vpop.permute.xlu0 %228
        %v232 = vcombine.high %v187, %v187
        %233 = vrot.lane.b32.xlu0 %v187, 1
        %v234 = vpop.permute.xlu0 %233
        %235 = vrot.lane.b32.xlu0 %v232, 1
        %v236 = vpop.permute.xlu0 %235
        %237 = vrot.lane.b32.xlu0 %v188, 1
        %v238 = vpop.permute.xlu0 %237
        %vm239 = vcmask 7168
        %v240 = vsel %vm239, %v234, %v236
        %v241 = vsel %vm239, %v236, %v238
        %v242 = vsel %vm239, %v238, %v229
        %v247 = vsel %vm239, %v229, %v234
        %v248 = vsel %vm222, 1, 0
        %v249 = vsel %vm223, 1, 0
        %v250 = vsel %vm224, 1, 0
        %v251 = vsel %vm225, 1, 0
        %vm252 = vcmp.eq.s32.totalorder %v248, 1
        %vm253 = vcmp.eq.s32.totalorder %v249, 1
        %vm254 = vcmp.eq.s32.totalorder %v250, 1
        %vm255 = vcmp.eq.s32.totalorder %v251, 1
        %v258 = vsel %vm252, %v247, %v187
        %v259 = vsel %vm253, %v240, %v232
        %v260 = vsel %vm254, %v241, %v188
        %v261 = vsel %vm255, %v242, %v227
        %vm262 = vcmp.eq.s32.totalorder %v206, 1
        %vm263 = vcmp.eq.s32.totalorder %v207, 1
        %vm264 = vcmp.eq.s32.totalorder %v208, 1
        %vm265 = vcmp.eq.s32.totalorder %v209, 1
        %vm266 = vcmp.eq.s32.totalorder %v210, 0
        %vm267 = vcmp.eq.s32.totalorder %v211, 0
        %vm268 = vcmp.eq.s32.totalorder %v212, 0
        %vm269 = vcmp.eq.s32.totalorder %v213, 0
        %vm270 = vmand %vm262, %vm266
        %vm271 = vmand %vm263, %vm267
        %vm272 = vmand %vm264, %vm268
        %vm273 = vmand %vm265, %vm269
        %274 = vrot.lane.b32.xlu0 %v227, 16
        %v275 = vpop.permute.xlu0 %274
        %277 = vrot.lane.b32.xlu0 %v187, 16
        %v278 = vpop.permute.xlu0 %277
        %279 = vrot.lane.b32.xlu0 %v232, 16
        %v280 = vpop.permute.xlu0 %279
        %281 = vrot.lane.b32.xlu0 %v188, 16
        %v282 = vpop.permute.xlu0 %281
        %vm283 = vcmask 130048
        %v284 = vsel %vm283, %v278, %v280
        %v285 = vsel %vm283, %v280, %v282
        %v286 = vsel %vm283, %v282, %v275
        %v291 = vsel %vm283, %v275, %v278
        %v292 = vsel %vm270, 1, 0
        %v293 = vsel %vm271, 1, 0
        %v294 = vsel %vm272, 1, 0
        %v295 = vsel %vm273, 1, 0
        %vm296 = vcmp.eq.s32.totalorder %v292, 1
        %vm297 = vcmp.eq.s32.totalorder %v293, 1
        %vm298 = vcmp.eq.s32.totalorder %v294, 1
        %vm299 = vcmp.eq.s32.totalorder %v295, 1
        %v300 = vsel %vm296, %v291, %v258
        %v301 = vsel %vm297, %v284, %v259
        %v302 = vsel %vm298, %v285, %v260
        %v303 = vsel %vm299, %v286, %v261
        %vm304 = vmand %vm262, %vm218
        %vm305 = vmand %vm263, %vm219
        %vm306 = vmand %vm264, %vm220
        %vm307 = vmand %vm265, %vm221
        %308 = vrot.lane.b32.xlu0 %v227, 17
        %v309 = vpop.permute.xlu0 %308
        %311 = vrot.lane.b32.xlu0 %v187, 17
        %v312 = vpop.permute.xlu0 %311
        %313 = vrot.lane.b32.xlu0 %v232, 17
        %v314 = vpop.permute.xlu0 %313
        %315 = vrot.lane.b32.xlu0 %v188, 17
        %v316 = vpop.permute.xlu0 %315
        %vm317 = vcmask 138240
        %v318 = vsel %vm317, %v312, %v314
        %v319 = vsel %vm317, %v314, %v316
        %v320 = vsel %vm317, %v316, %v309
        %v325 = vsel %vm317, %v309, %v312
        %v326 = vsel %vm304, 1, 0
        %v327 = vsel %vm305, 1, 0
        %v328 = vsel %vm306, 1, 0
        %v329 = vsel %vm307, 1, 0
        %vm330 = vcmp.eq.s32.totalorder %v326, 1
        %vm331 = vcmp.eq.s32.totalorder %v327, 1
        %vm332 = vcmp.eq.s32.totalorder %v328, 1
        %vm333 = vcmp.eq.s32.totalorder %v329, 1
        %v334 = vsel %vm330, %v325, %v300
        %v335 = vsel %vm331, %v318, %v301
        %v336 = vsel %vm332, %v319, %v302
        %v337 = vsel %vm333, %v320, %v303
        %vm338 = vcmp.ge.s32.totalorder %v202, 1
        %vm339 = vcmp.ge.s32.totalorder %v203, 1
        %vm340 = vcmp.ge.s32.totalorder %v204, 1
        %vm341 = vcmp.ge.s32.totalorder %v205, 1
        %vm342 = vcmp.ge.s32.totalorder %v194, 1
        %vm343 = vcmp.ge.s32.totalorder %v195, 1
        %vm344 = vcmp.ge.s32.totalorder %v196, 1
        %vm345 = vcmp.ge.s32.totalorder %v197, 1
        %vm346 = vmand %vm338, %vm342
        %vm347 = vmand %vm339, %vm343
        %vm348 = vmand %vm340, %vm344
        %vm349 = vmand %vm341, %vm345
        %v350 = vsel %vm346, 1, 0
        %v351 = vsel %vm347, 1, 0
        %v352 = vsel %vm348, 1, 0
        %v353 = vsel %vm349, 1, 0
        %vm354 = vcmp.eq.s32.totalorder %v350, 1
        %vm355 = vcmp.eq.s32.totalorder %v351, 1
        %vm356 = vcmp.eq.s32.totalorder %v352, 1
        %vm357 = vcmp.eq.s32.totalorder %v353, 1
        %v358 = vsel %vm354, %v325, 0.0
        %v359 = vsel %vm355, %v318, 0.0
        %v360 = vsel %vm356, %v319, 0.0
        %v361 = vsel %vm357, %v320, 0.0
        %362 = vst [vmem:[#allocation2] sm:$0xf] %v358
        %363 = vst [vmem:[#allocation2 + $0x8] sm:$0xf] %v359
        %364 = vst [vmem:[#allocation2 + $0x10] sm:$0xf] %v360
        %365 = vst [vmem:[#allocation2 + $0x18] sm:$0xf] %v361
        %v366 = vsel %vm338, 1, 0
        %v367 = vsel %vm339, 1, 0
        %v368 = vsel %vm340, 1, 0
        %v369 = vsel %vm341, 1, 0
        %vm370 = vcmp.eq.s32.totalorder %v366, 1
        %vm371 = vcmp.eq.s32.totalorder %v367, 1
        %vm372 = vcmp.eq.s32.totalorder %v368, 1
        %vm373 = vcmp.eq.s32.totalorder %v369, 1
        %v374 = vsel %vm370, %v291, 0.0
        %v375 = vsel %vm371, %v284, 0.0
        %v376 = vsel %vm372, %v285, 0.0
        %v377 = vsel %vm373, %v286, 0.0
        %v382 = vrot.slane %v374, 4
        %v383 = vrot.slane %v375, 4
        %v384 = vrot.slane %v376, 4
        %v385 = vrot.slane %v377, 4
        %390 = vst [vmem:[#allocation2] sm:$0xf0] %v382
        %391 = vst [vmem:[#allocation2 + $0x8] sm:$0xf0] %v383
        %392 = vst [vmem:[#allocation2 + $0x10] sm:$0xf0] %v384
        %393 = vst [vmem:[#allocation2 + $0x18] sm:$0xf0] %v385
        %394 = vrot.lane.b32.xlu0 %v227, 15
        %v395 = vpop.permute.xlu0 %394
        %397 = vrot.lane.b32.xlu0 %v187, 15
        %v398 = vpop.permute.xlu0 %397
        %399 = vrot.lane.b32.xlu0 %v232, 15
        %v400 = vpop.permute.xlu0 %399
        %401 = vrot.lane.b32.xlu0 %v188, 15
        %v402 = vpop.permute.xlu0 %401
        %vm403 = vcmask 121856
        %v404 = vsel %vm403, %v398, %v400
        %v405 = vsel %vm403, %v400, %v402
        %v406 = vsel %vm403, %v402, %v395
        %v411 = vsel %vm403, %v395, %v398
        %vm412 = vcmp.le.s32.totalorder %v194, 14
        %vm413 = vcmp.le.s32.totalorder %v195, 14
        %vm414 = vcmp.le.s32.totalorder %v196, 14
        %vm415 = vcmp.le.s32.totalorder %v197, 14
        %vm416 = vmand %vm338, %vm412
        %vm417 = vmand %vm339, %vm413
        %vm418 = vmand %vm340, %vm414
        %vm419 = vmand %vm341, %vm415
        %v420 = vsel %vm416, 1, 0
        %v421 = vsel %vm417, 1, 0
        %v422 = vsel %vm418, 1, 0
        %v423 = vsel %vm419, 1, 0
        %vm424 = vcmp.eq.s32.totalorder %v420, 1
        %vm425 = vcmp.eq.s32.totalorder %v421, 1
        %vm426 = vcmp.eq.s32.totalorder %v422, 1
        %vm427 = vcmp.eq.s32.totalorder %v423, 1
        %v428 = vsel %vm424, %v411, 0.0
        %v429 = vsel %vm425, %v404, 0.0
        %v430 = vsel %vm426, %v405, 0.0
        %v431 = vsel %vm427, %v406, 0.0
        %432 = vst [vmem:[#allocation2 + $0x20] sm:$0xf] %v428
        %433 = vst [vmem:[#allocation2 + $0x28] sm:$0xf] %v429
        %434 = vst [vmem:[#allocation2 + $0x30] sm:$0xf] %v430
        %435 = vst [vmem:[#allocation2 + $0x38] sm:$0xf] %v431
        %v436 = vsel %vm342, 1, 0
        %v437 = vsel %vm343, 1, 0
        %v438 = vsel %vm344, 1, 0
        %v439 = vsel %vm345, 1, 0
        %vm440 = vcmp.eq.s32.totalorder %v436, 1
        %vm441 = vcmp.eq.s32.totalorder %v437, 1
        %vm442 = vcmp.eq.s32.totalorder %v438, 1
        %vm443 = vcmp.eq.s32.totalorder %v439, 1
        %v444 = vsel %vm440, %v247, 0.0
        %v445 = vsel %vm441, %v240, 0.0
        %v446 = vsel %vm442, %v241, 0.0
        %v447 = vsel %vm443, %v242, 0.0
        %v452 = vrot.slane %v444, 4
        %v453 = vrot.slane %v445, 4
        %v454 = vrot.slane %v446, 4
        %v455 = vrot.slane %v447, 4
        %460 = vst [vmem:[#allocation2 + $0x20] sm:$0xf0] %v452
        %461 = vst [vmem:[#allocation2 + $0x28] sm:$0xf0] %v453
        %462 = vst [vmem:[#allocation2 + $0x30] sm:$0xf0] %v454
        %463 = vst [vmem:[#allocation2 + $0x38] sm:$0xf0] %v455
        %464 = vst [vmem:[#allocation2 + $0x40] sm:$0xf] %v187
        %465 = vst [vmem:[#allocation2 + $0x48] sm:$0xf] %v232
        %466 = vst [vmem:[#allocation2 + $0x50] sm:$0xf] %v188
        %467 = vst [vmem:[#allocation2 + $0x58] sm:$0xf] %v227
        %468 = vrot.lane.b32.xlu0 %v187, 127
        %v469 = vpop.permute.xlu0 %468
        %470 = vrot.lane.b32.xlu0 %v232, 127
        %v471 = vpop.permute.xlu0 %470
        %472 = vrot.lane.b32.xlu0 %v188, 127
        %v473 = vpop.permute.xlu0 %472
        %474 = vrot.lane.b32.xlu0 %v227, 127
        %v475 = vpop.permute.xlu0 %474
        %vm476 = vcmask 1039360
        %v477 = vsel %vm476, %v469, %v471
        %v478 = vsel %vm476, %v471, %v473
        %v479 = vsel %vm476, %v473, %v475
        %v485 = vsel %vm476, %v475, %v469
        %v486 = vsel %vm412, 1, 0
        %v487 = vsel %vm413, 1, 0
        %v488 = vsel %vm414, 1, 0
        %v489 = vsel %vm415, 1, 0
        %vm490 = vcmp.eq.s32.totalorder %v486, 1
        %vm491 = vcmp.eq.s32.totalorder %v487, 1
        %vm492 = vcmp.eq.s32.totalorder %v488, 1
        %vm493 = vcmp.eq.s32.totalorder %v489, 1
        %v494 = vsel %vm490, %v477, 0.0
        %v495 = vsel %vm491, %v478, 0.0
        %v496 = vsel %vm492, %v479, 0.0
        %v497 = vsel %vm493, %v485, 0.0
        %v502 = vrot.slane %v494, 4
        %v503 = vrot.slane %v495, 4
        %v504 = vrot.slane %v496, 4
        %v505 = vrot.slane %v497, 4
        %510 = vst [vmem:[#allocation2 + $0x40] sm:$0xf0] %v502
        %511 = vst [vmem:[#allocation2 + $0x48] sm:$0xf0] %v503
        %512 = vst [vmem:[#allocation2 + $0x50] sm:$0xf0] %v504
        %513 = vst [vmem:[#allocation2 + $0x58] sm:$0xf0] %v505
        %514 = vrot.lane.b32.xlu0 %v187, 113
        %v515 = vpop.permute.xlu0 %514
        %516 = vrot.lane.b32.xlu0 %v232, 113
        %v517 = vpop.permute.xlu0 %516
        %518 = vrot.lane.b32.xlu0 %v188, 113
        %v519 = vpop.permute.xlu0 %518
        %520 = vrot.lane.b32.xlu0 %v227, 113
        %v521 = vpop.permute.xlu0 %520
        %vm522 = vcmask 924672
        %v523 = vsel %vm522, %v515, %v517
        %v524 = vsel %vm522, %v517, %v519
        %v525 = vsel %vm522, %v519, %v521
        %v531 = vsel %vm522, %v521, %v515
        %vm532 = vcmp.le.s32.totalorder %v202, 14
        %vm533 = vcmp.le.s32.totalorder %v203, 14
        %vm534 = vcmp.le.s32.totalorder %v204, 14
        %vm535 = vcmp.le.s32.totalorder %v205, 14
        %vm536 = vmand %vm532, %vm342
        %vm537 = vmand %vm533, %vm343
        %vm538 = vmand %vm534, %vm344
        %vm539 = vmand %vm535, %vm345
        %v540 = vsel %vm536, 1, 0
        %v541 = vsel %vm537, 1, 0
        %v542 = vsel %vm538, 1, 0
        %v543 = vsel %vm539, 1, 0
        %vm544 = vcmp.eq.s32.totalorder %v540, 1
        %vm545 = vcmp.eq.s32.totalorder %v541, 1
        %vm546 = vcmp.eq.s32.totalorder %v542, 1
        %vm547 = vcmp.eq.s32.totalorder %v543, 1
        %v548 = vsel %vm544, %v523, 0.0
        %v549 = vsel %vm545, %v524, 0.0
        %v550 = vsel %vm546, %v525, 0.0
        %v551 = vsel %vm547, %v531, 0.0
        %552 = vst [vmem:[#allocation2 + $0x60] sm:$0xf] %v548
        %553 = vst [vmem:[#allocation2 + $0x68] sm:$0xf] %v549
        %554 = vst [vmem:[#allocation2 + $0x70] sm:$0xf] %v550
        %555 = vst [vmem:[#allocation2 + $0x78] sm:$0xf] %v551
        %556 = vrot.lane.b32.xlu0 %v187, 112
        %v557 = vpop.permute.xlu0 %556
        %558 = vrot.lane.b32.xlu0 %v232, 112
        %v559 = vpop.permute.xlu0 %558
        %560 = vrot.lane.b32.xlu0 %v188, 112
        %v561 = vpop.permute.xlu0 %560
        %562 = vrot.lane.b32.xlu0 %v227, 112
        %v563 = vpop.permute.xlu0 %562
        %vm564 = vcmask 916480
        %v565 = vsel %vm564, %v557, %v559
        %v566 = vsel %vm564, %v559, %v561
        %v567 = vsel %vm564, %v561, %v563
        %v573 = vsel %vm564, %v563, %v557
        %v574 = vsel %vm532, 1, 0
        %v575 = vsel %vm533, 1, 0
        %v576 = vsel %vm534, 1, 0
        %v577 = vsel %vm535, 1, 0
        %vm578 = vcmp.eq.s32.totalorder %v574, 1
        %vm579 = vcmp.eq.s32.totalorder %v575, 1
        %vm580 = vcmp.eq.s32.totalorder %v576, 1
        %vm581 = vcmp.eq.s32.totalorder %v577, 1
        %v582 = vsel %vm578, %v565, 0.0
        %v583 = vsel %vm579, %v566, 0.0
        %v584 = vsel %vm580, %v567, 0.0
        %v585 = vsel %vm581, %v573, 0.0
        %v590 = vrot.slane %v582, 4
        %v591 = vrot.slane %v583, 4
        %v592 = vrot.slane %v584, 4
        %v593 = vrot.slane %v585, 4
        %598 = vst [vmem:[#allocation2 + $0x60] sm:$0xf0] %v590
        %599 = vst [vmem:[#allocation2 + $0x68] sm:$0xf0] %v591
        %600 = vst [vmem:[#allocation2 + $0x70] sm:$0xf0] %v592
        %601 = vst [vmem:[#allocation2 + $0x78] sm:$0xf0] %v593
        %602 = vrot.lane.b32.xlu0 %v187, 111
        %v603 = vpop.permute.xlu0 %602
        %604 = vrot.lane.b32.xlu0 %v232, 111
        %v605 = vpop.permute.xlu0 %604
        %606 = vrot.lane.b32.xlu0 %v188, 111
        %v607 = vpop.permute.xlu0 %606
        %608 = vrot.lane.b32.xlu0 %v227, 111
        %v609 = vpop.permute.xlu0 %608
        %vm610 = vcmask 908288
        %v611 = vsel %vm610, %v603, %v605
        %v612 = vsel %vm610, %v605, %v607
        %v613 = vsel %vm610, %v607, %v609
        %v619 = vsel %vm610, %v609, %v603
        %vm620 = vmand %vm532, %vm412
        %vm621 = vmand %vm533, %vm413
        %vm622 = vmand %vm534, %vm414
        %vm623 = vmand %vm535, %vm415
        %v624 = vsel %vm620, 1, 0
        %v625 = vsel %vm621, 1, 0
        %v626 = vsel %vm622, 1, 0
        %v627 = vsel %vm623, 1, 0
        %vm628 = vcmp.eq.s32.totalorder %v624, 1
        %vm629 = vcmp.eq.s32.totalorder %v625, 1
        %vm630 = vcmp.eq.s32.totalorder %v626, 1
        %vm631 = vcmp.eq.s32.totalorder %v627, 1
        %v632 = vsel %vm628, %v611, 0.0
        %v633 = vsel %vm629, %v612, 0.0
        %v634 = vsel %vm630, %v613, 0.0
        %v635 = vsel %vm631, %v619, 0.0
        %636 = vst [vmem:[#allocation2 + $0x80] sm:$0xf] %v632
        %637 = vst [vmem:[#allocation2 + $0x88] sm:$0xf] %v633
        %638 = vst [vmem:[#allocation2 + $0x90] sm:$0xf] %v634
        %639 = vst [vmem:[#allocation2 + $0x98] sm:$0xf] %v635
        %641 = vrot.lane.b32.xlu0 %v337, 34
        %v642 = vpop.permute.xlu0 %641
        %647 = vrot.lane.b32.xlu0 %v334, 34
        %v648 = vpop.permute.xlu0 %647
        %649 = vrot.lane.b32.xlu0 %v335, 34
        %v650 = vpop.permute.xlu0 %649
        %651 = vrot.lane.b32.xlu0 %v336, 34
        %v652 = vpop.permute.xlu0 %651
        %vm653 = vcmask 277504
        %v654 = vsel %vm653, %v648, %v650
        %v655 = vsel %vm653, %v650, %v652
        %v656 = vsel %vm653, %v652, %v642
        %v661 = vsel %vm653, %v642, %v648
        %vm662 = vcmp.ge.s32.totalorder %v202, 2
        %vm663 = vcmp.ge.s32.totalorder %v203, 2
        %vm664 = vcmp.ge.s32.totalorder %v204, 2
        %vm665 = vcmp.ge.s32.totalorder %v205, 2
        %vm666 = vcmp.ge.s32.totalorder %v194, 2
        %vm667 = vcmp.ge.s32.totalorder %v195, 2
        %vm668 = vcmp.ge.s32.totalorder %v196, 2
        %vm669 = vcmp.ge.s32.totalorder %v197, 2
        %vm670 = vmand %vm662, %vm666
        %vm671 = vmand %vm663, %vm667
        %vm672 = vmand %vm664, %vm668
        %vm673 = vmand %vm665, %vm669
        %v674 = vsel %vm670, 1, 0
        %v675 = vsel %vm671, 1, 0
        %v676 = vsel %vm672, 1, 0
        %v677 = vsel %vm673, 1, 0
        %vm678 = vcmp.eq.s32.totalorder %v674, 1
        %vm679 = vcmp.eq.s32.totalorder %v675, 1
        %vm680 = vcmp.eq.s32.totalorder %v676, 1
        %vm681 = vcmp.eq.s32.totalorder %v677, 1
        %v682 = vsel %vm678, %v661, 0.0
        %v683 = vsel %vm679, %v654, 0.0
        %v684 = vsel %vm680, %v655, 0.0
        %v685 = vsel %vm681, %v656, 0.0
        %v690 = vrot.slane %v682, 4
        %v691 = vrot.slane %v683, 4
        %v692 = vrot.slane %v684, 4
        %v693 = vrot.slane %v685, 4
        %698 = vst [vmem:[#allocation2 + $0x80] sm:$0xf0] %v690
        %699 = vst [vmem:[#allocation2 + $0x88] sm:$0xf0] %v691
        %700 = vst [vmem:[#allocation2 + $0x90] sm:$0xf0] %v692
        %701 = vst [vmem:[#allocation2 + $0x98] sm:$0xf0] %v693
        %702 = vrot.lane.b32.xlu0 %v337, 32
        %v703 = vpop.permute.xlu0 %702
        %705 = vrot.lane.b32.xlu0 %v334, 32
        %v706 = vpop.permute.xlu0 %705
        %707 = vrot.lane.b32.xlu0 %v335, 32
        %v708 = vpop.permute.xlu0 %707
        %709 = vrot.lane.b32.xlu0 %v336, 32
        %v710 = vpop.permute.xlu0 %709
        %vm711 = vcmask 261120
        %v712 = vsel %vm711, %v706, %v708
        %v713 = vsel %vm711, %v708, %v710
        %v714 = vsel %vm711, %v710, %v703
        %v719 = vsel %vm711, %v703, %v706
        %v720 = vsel %vm662, 1, 0
        %v721 = vsel %vm663, 1, 0
        %v722 = vsel %vm664, 1, 0
        %v723 = vsel %vm665, 1, 0
        %vm724 = vcmp.eq.s32.totalorder %v720, 1
        %vm725 = vcmp.eq.s32.totalorder %v721, 1
        %vm726 = vcmp.eq.s32.totalorder %v722, 1
        %vm727 = vcmp.eq.s32.totalorder %v723, 1
        %v728 = vsel %vm724, %v719, 0.0
        %v729 = vsel %vm725, %v712, 0.0
        %v730 = vsel %vm726, %v713, 0.0
        %v731 = vsel %vm727, %v714, 0.0
        %732 = vst [vmem:[#allocation2 + $0xa0] sm:$0xf] %v728
        %733 = vst [vmem:[#allocation2 + $0xa8] sm:$0xf] %v729
        %734 = vst [vmem:[#allocation2 + $0xb0] sm:$0xf] %v730
        %735 = vst [vmem:[#allocation2 + $0xb8] sm:$0xf] %v731
        %736 = vrot.lane.b32.xlu0 %v337, 30
        %v737 = vpop.permute.xlu0 %736
        %739 = vrot.lane.b32.xlu0 %v334, 30
        %v740 = vpop.permute.xlu0 %739
        %741 = vrot.lane.b32.xlu0 %v335, 30
        %v742 = vpop.permute.xlu0 %741
        %743 = vrot.lane.b32.xlu0 %v336, 30
        %v744 = vpop.permute.xlu0 %743
        %vm745 = vcmask 244736
        %v746 = vsel %vm745, %v740, %v742
        %v747 = vsel %vm745, %v742, %v744
        %v748 = vsel %vm745, %v744, %v737
        %v753 = vsel %vm745, %v737, %v740
        %vm754 = vcmp.le.s32.totalorder %v194, 13
        %vm755 = vcmp.le.s32.totalorder %v195, 13
        %vm756 = vcmp.le.s32.totalorder %v196, 13
        %vm757 = vcmp.le.s32.totalorder %v197, 13
        %vm758 = vmand %vm662, %vm754
        %vm759 = vmand %vm663, %vm755
        %vm760 = vmand %vm664, %vm756
        %vm761 = vmand %vm665, %vm757
        %v762 = vsel %vm758, 1, 0
        %v763 = vsel %vm759, 1, 0
        %v764 = vsel %vm760, 1, 0
        %v765 = vsel %vm761, 1, 0
        %vm766 = vcmp.eq.s32.totalorder %v762, 1
        %vm767 = vcmp.eq.s32.totalorder %v763, 1
        %vm768 = vcmp.eq.s32.totalorder %v764, 1
        %vm769 = vcmp.eq.s32.totalorder %v765, 1
        %v770 = vsel %vm766, %v753, 0.0
        %v771 = vsel %vm767, %v746, 0.0
        %v772 = vsel %vm768, %v747, 0.0
        %v773 = vsel %vm769, %v748, 0.0
        %v778 = vrot.slane %v770, 4
        %v779 = vrot.slane %v771, 4
        %v780 = vrot.slane %v772, 4
        %v781 = vrot.slane %v773, 4
        %786 = vst [vmem:[#allocation2 + $0xa0] sm:$0xf0] %v778
        %787 = vst [vmem:[#allocation2 + $0xa8] sm:$0xf0] %v779
        %788 = vst [vmem:[#allocation2 + $0xb0] sm:$0xf0] %v780
        %789 = vst [vmem:[#allocation2 + $0xb8] sm:$0xf0] %v781
        %790 = vrot.lane.b32.xlu0 %v337, 2
        %v791 = vpop.permute.xlu0 %790
        %793 = vrot.lane.b32.xlu0 %v334, 2
        %v794 = vpop.permute.xlu0 %793
        %795 = vrot.lane.b32.xlu0 %v335, 2
        %v796 = vpop.permute.xlu0 %795
        %797 = vrot.lane.b32.xlu0 %v336, 2
        %v798 = vpop.permute.xlu0 %797
        %vm799 = vcmask 15360
        %v800 = vsel %vm799, %v794, %v796
        %v801 = vsel %vm799, %v796, %v798
        %v802 = vsel %vm799, %v798, %v791
        %v807 = vsel %vm799, %v791, %v794
        %v808 = vsel %vm666, 1, 0
        %v809 = vsel %vm667, 1, 0
        %v810 = vsel %vm668, 1, 0
        %v811 = vsel %vm669, 1, 0
        %vm812 = vcmp.eq.s32.totalorder %v808, 1
        %vm813 = vcmp.eq.s32.totalorder %v809, 1
        %vm814 = vcmp.eq.s32.totalorder %v810, 1
        %vm815 = vcmp.eq.s32.totalorder %v811, 1
        %v816 = vsel %vm812, %v807, 0.0
        %v817 = vsel %vm813, %v800, 0.0
        %v818 = vsel %vm814, %v801, 0.0
        %v819 = vsel %vm815, %v802, 0.0
        %820 = vst [vmem:[#allocation2 + $0xc0] sm:$0xf] %v816
        %821 = vst [vmem:[#allocation2 + $0xc8] sm:$0xf] %v817
        %822 = vst [vmem:[#allocation2 + $0xd0] sm:$0xf] %v818
        %823 = vst [vmem:[#allocation2 + $0xd8] sm:$0xf] %v819
        %v824 = vrot.slane %v334, 4
        %v825 = vrot.slane %v335, 4
        %v826 = vrot.slane %v336, 4
        %v827 = vrot.slane %v337, 4
        %832 = vst [vmem:[#allocation2 + $0xc0] sm:$0xf0] %v824
        %833 = vst [vmem:[#allocation2 + $0xc8] sm:$0xf0] %v825
        %834 = vst [vmem:[#allocation2 + $0xd0] sm:$0xf0] %v826
        %835 = vst [vmem:[#allocation2 + $0xd8] sm:$0xf0] %v827
        %836 = vrot.lane.b32.xlu0 %v334, 126
        %v837 = vpop.permute.xlu0 %836
        %838 = vrot.lane.b32.xlu0 %v335, 126
        %v839 = vpop.permute.xlu0 %838
        %840 = vrot.lane.b32.xlu0 %v336, 126
        %v841 = vpop.permute.xlu0 %840
        %842 = vrot.lane.b32.xlu0 %v337, 126
        %v843 = vpop.permute.xlu0 %842
        %vm844 = vcmask 1031168
        %v845 = vsel %vm844, %v837, %v839
        %v846 = vsel %vm844, %v839, %v841
        %v847 = vsel %vm844, %v841, %v843
        %v853 = vsel %vm844, %v843, %v837
        %v854 = vsel %vm754, 1, 0
        %v855 = vsel %vm755, 1, 0
        %v856 = vsel %vm756, 1, 0
        %v857 = vsel %vm757, 1, 0
        %vm858 = vcmp.eq.s32.totalorder %v854, 1
        %vm859 = vcmp.eq.s32.totalorder %v855, 1
        %vm860 = vcmp.eq.s32.totalorder %v856, 1
        %vm861 = vcmp.eq.s32.totalorder %v857, 1
        %v862 = vsel %vm858, %v845, 0.0
        %v863 = vsel %vm859, %v846, 0.0
        %v864 = vsel %vm860, %v847, 0.0
        %v865 = vsel %vm861, %v853, 0.0
        %866 = vst [vmem:[#allocation2 + $0xe0] sm:$0xf] %v862
        %867 = vst [vmem:[#allocation2 + $0xe8] sm:$0xf] %v863
        %868 = vst [vmem:[#allocation2 + $0xf0] sm:$0xf] %v864
        %869 = vst [vmem:[#allocation2 + $0xf8] sm:$0xf] %v865
        %870 = vrot.lane.b32.xlu0 %v334, 98
        %v871 = vpop.permute.xlu0 %870
        %872 = vrot.lane.b32.xlu0 %v335, 98
        %v873 = vpop.permute.xlu0 %872
        %874 = vrot.lane.b32.xlu0 %v336, 98
        %v875 = vpop.permute.xlu0 %874
        %876 = vrot.lane.b32.xlu0 %v337, 98
        %v877 = vpop.permute.xlu0 %876
        %vm878 = vcmask 801792
        %v879 = vsel %vm878, %v871, %v873
        %v880 = vsel %vm878, %v873, %v875
        %v881 = vsel %vm878, %v875, %v877
        %v887 = vsel %vm878, %v877, %v871
        %vm888 = vcmp.le.s32.totalorder %v202, 13
        %vm889 = vcmp.le.s32.totalorder %v203, 13
        %vm890 = vcmp.le.s32.totalorder %v204, 13
        %vm891 = vcmp.le.s32.totalorder %v205, 13
        %vm892 = vmand %vm888, %vm666
        %vm893 = vmand %vm889, %vm667
        %vm894 = vmand %vm890, %vm668
        %vm895 = vmand %vm891, %vm669
        %v896 = vsel %vm892, 1, 0
        %v897 = vsel %vm893, 1, 0
        %v898 = vsel %vm894, 1, 0
        %v899 = vsel %vm895, 1, 0
        %vm900 = vcmp.eq.s32.totalorder %v896, 1
        %vm901 = vcmp.eq.s32.totalorder %v897, 1
        %vm902 = vcmp.eq.s32.totalorder %v898, 1
        %vm903 = vcmp.eq.s32.totalorder %v899, 1
        %v904 = vsel %vm900, %v879, 0.0
        %v905 = vsel %vm901, %v880, 0.0
        %v906 = vsel %vm902, %v881, 0.0
        %v907 = vsel %vm903, %v887, 0.0
        %v912 = vrot.slane %v904, 4
        %v913 = vrot.slane %v905, 4
        %v914 = vrot.slane %v906, 4
        %v915 = vrot.slane %v907, 4
        %920 = vst [vmem:[#allocation2 + $0xe0] sm:$0xf0] %v912
        %921 = vst [vmem:[#allocation2 + $0xe8] sm:$0xf0] %v913
        %922 = vst [vmem:[#allocation2 + $0xf0] sm:$0xf0] %v914
        %923 = vst [vmem:[#allocation2 + $0xf8] sm:$0xf0] %v915
        %924 = vrot.lane.b32.xlu0 %v334, 96
        %v925 = vpop.permute.xlu0 %924
        %926 = vrot.lane.b32.xlu0 %v335, 96
        %v927 = vpop.permute.xlu0 %926
        %928 = vrot.lane.b32.xlu0 %v336, 96
        %v929 = vpop.permute.xlu0 %928
        %930 = vrot.lane.b32.xlu0 %v337, 96
        %v931 = vpop.permute.xlu0 %930
        %vm932 = vcmask 785408
        %v933 = vsel %vm932, %v925, %v927
        %v934 = vsel %vm932, %v927, %v929
        %v935 = vsel %vm932, %v929, %v931
        %v941 = vsel %vm932, %v931, %v925
        %v942 = vsel %vm888, 1, 0
        %v943 = vsel %vm889, 1, 0
        %v944 = vsel %vm890, 1, 0
        %v945 = vsel %vm891, 1, 0
        %vm946 = vcmp.eq.s32.totalorder %v942, 1
        %vm947 = vcmp.eq.s32.totalorder %v943, 1
        %vm948 = vcmp.eq.s32.totalorder %v944, 1
        %vm949 = vcmp.eq.s32.totalorder %v945, 1
        %v950 = vsel %vm946, %v933, 0.0
        %v951 = vsel %vm947, %v934, 0.0
        %v952 = vsel %vm948, %v935, 0.0
        %v953 = vsel %vm949, %v941, 0.0
        %954 = vst [vmem:[#allocation2 + $0x100] sm:$0xf] %v950
        %955 = vst [vmem:[#allocation2 + $0x108] sm:$0xf] %v951
        %956 = vst [vmem:[#allocation2 + $0x110] sm:$0xf] %v952
        %957 = vst [vmem:[#allocation2 + $0x118] sm:$0xf] %v953
        %958 = vrot.lane.b32.xlu0 %v334, 94
        %v959 = vpop.permute.xlu0 %958
        %960 = vrot.lane.b32.xlu0 %v335, 94
        %v961 = vpop.permute.xlu0 %960
        %962 = vrot.lane.b32.xlu0 %v336, 94
        %v963 = vpop.permute.xlu0 %962
        %964 = vrot.lane.b32.xlu0 %v337, 94
        %v965 = vpop.permute.xlu0 %964
        %vm966 = vcmask 769024
        %v967 = vsel %vm966, %v959, %v961
        %v968 = vsel %vm966, %v961, %v963
        %v969 = vsel %vm966, %v963, %v965
        %v975 = vsel %vm966, %v965, %v959
        %vm976 = vmand %vm888, %vm754
        %vm977 = vmand %vm889, %vm755
        %vm978 = vmand %vm890, %vm756
        %vm979 = vmand %vm891, %vm757
        %v980 = vsel %vm976, 1, 0
        %v981 = vsel %vm977, 1, 0
        %v982 = vsel %vm978, 1, 0
        %v983 = vsel %vm979, 1, 0
        %vm984 = vcmp.eq.s32.totalorder %v980, 1
        %vm985 = vcmp.eq.s32.totalorder %v981, 1
        %vm986 = vcmp.eq.s32.totalorder %v982, 1
        %vm987 = vcmp.eq.s32.totalorder %v983, 1
        %v988 = vsel %vm984, %v967, 0.0
        %v989 = vsel %vm985, %v968, 0.0
        %v990 = vsel %vm986, %v969, 0.0
        %v991 = vsel %vm987, %v975, 0.0
        %v996 = vrot.slane %v988, 4
        %v997 = vrot.slane %v989, 4
        %v998 = vrot.slane %v990, 4
        %v999 = vrot.slane %v991, 4
        %1004 = vst [vmem:[#allocation2 + $0x100] sm:$0xf0] %v996
        %1005 = vst [vmem:[#allocation2 + $0x108] sm:$0xf0] %v997
        %1006 = vst [vmem:[#allocation2 + $0x110] sm:$0xf0] %v998
        %1007 = vst [vmem:[#allocation2 + $0x118] sm:$0xf0] %v999
        %v1008 = vld [vmem:[%s1] sm:$0xf]
        %v1009 = vld [vmem:[#allocation2] sm:$0xff]
        %v1010 = vld [vmem:[#allocation2 + $0x8] sm:$0xff]
        %v1011 = vld [vmem:[#allocation2 + $0x10] sm:$0xff]
        %v1012 = vld [vmem:[#allocation2 + $0x18] sm:$0xff]
        %v1013 = vld [vmem:[#allocation2 + $0x20] sm:$0xff]
        %v1014 = vld [vmem:[#allocation2 + $0x28] sm:$0xff]
        %v1015 = vld [vmem:[#allocation2 + $0x30] sm:$0xff]
        %v1016 = vld [vmem:[#allocation2 + $0x38] sm:$0xff]
        %v1017 = vld [vmem:[#allocation2 + $0x40] sm:$0xff]
        %v1018 = vld [vmem:[#allocation2 + $0x48] sm:$0xff]
        %v1019 = vld [vmem:[#allocation2 + $0x50] sm:$0xff]
        %v1020 = vld [vmem:[#allocation2 + $0x58] sm:$0xff]
        %v1021 = vld [vmem:[#allocation2 + $0x60] sm:$0xff]
        %v1022 = vld [vmem:[#allocation2 + $0x68] sm:$0xff]
        %v1023 = vld [vmem:[#allocation2 + $0x70] sm:$0xff]
        %v1024 = vld [vmem:[#allocation2 + $0x78] sm:$0xff]
        %v1025 = vld [vmem:[#allocation2 + $0x80] sm:$0xff]
        %v1026 = vld [vmem:[#allocation2 + $0x88] sm:$0xff]
        %v1027 = vld [vmem:[#allocation2 + $0x90] sm:$0xff]
        %v1028 = vld [vmem:[#allocation2 + $0x98] sm:$0xff]
        %v1029 = vld [vmem:[#allocation2 + $0xa0] sm:$0xff]
        %v1030 = vld [vmem:[#allocation2 + $0xa8] sm:$0xff]
        %v1031 = vld [vmem:[#allocation2 + $0xb0] sm:$0xff]
        %v1032 = vld [vmem:[#allocation2 + $0xb8] sm:$0xff]
        %v1033 = vld [vmem:[#allocation2 + $0xc0] sm:$0xff]
        %v1034 = vld [vmem:[#allocation2 + $0xc8] sm:$0xff]
        %v1035 = vld [vmem:[#allocation2 + $0xd0] sm:$0xff]
        %v1036 = vld [vmem:[#allocation2 + $0xd8] sm:$0xff]
        %v1037 = vld [vmem:[#allocation2 + $0xe0] sm:$0xff]
        %v1038 = vld [vmem:[#allocation2 + $0xe8] sm:$0xff]
        %v1039 = vld [vmem:[#allocation2 + $0xf0] sm:$0xff]
        %v1040 = vld [vmem:[#allocation2 + $0xf8] sm:$0xff]
        %v1041 = vld [vmem:[#allocation2 + $0x100] sm:$0xff]
        %v1042 = vld [vmem:[#allocation2 + $0x108] sm:$0xff]
        %v1043 = vld [vmem:[#allocation2 + $0x110] sm:$0xff]
        %v1044 = vld [vmem:[#allocation2 + $0x118] sm:$0xff]
        %v1045 = vld [vmem:[%s2] sm:$0xf]
        %1047 = vset.pattern.permute.xlu0 0
        %1048 = vperm.xlu0 %1047, %v1045
        %v1049 = vpop.permute.xlu0 %1048
        %vm1051 = vcmask 588800
        %v1053 = vsel %vm1051, %v1008, 0
        %1055 = vmatprep.subr.mxu0 %v1010
        %1056 = vmatpush1.msra.mxu0 %v1009
        %1057 = vmatprep.subr.mxu0 %v1014
        %1058 = vmatpush1.msra.mxu0 %v1013
        %1059 = vmatprep.subr.mxu0 %v1018
        %1060 = vmatpush1.msra.mxu0 %v1017
        %1061 = vmatprep.subr.mxu0 %v1022
        %1062 = vmatpush1.msra.mxu0 %v1021
        %1063 = vmatprep.subr.mxu0 %v1026
        %1064 = vmatpush1.msra.mxu0 %v1025
        %1065 = vmatprep.subr.mxu0 %v1030
        %1066 = vmatpush1.msra.mxu0 %v1029
        %1067 = vmatprep.subr.mxu0 %v1034
        %1068 = vmatpush1.msra.mxu0 %v1033
        %1069 = vmatprep.subr.mxu0 %v1038
        %1070 = vmatpush1.msra.mxu0 %v1037
        %1071 = vmatprep.subr.mxu0 %v1042
        %1072 = vmatpush1.msra.mxu0 %v1041
        %1073 = vmatprep.subr.mxu0 0.0
        %1074 = vmatpush1.msra.mxu0 0.0
        %1075 = vmatprep.subr.mxu0 0.0
        %1076 = vmatpush1.msra.mxu0 0.0
        %1077 = vmatprep.subr.mxu0 0.0
        %1078 = vmatpush1.msra.mxu0 0.0
        %1079 = vmatprep.subr.mxu0 0.0
        %1080 = vmatpush1.msra.mxu0 0.0
        %1081 = vmatprep.subr.mxu0 0.0
        %1082 = vmatpush1.msra.mxu0 0.0
        %1083 = vmatprep.subr.mxu0 0.0
        %1084 = vmatpush1.msra.mxu0 0.0
        %1085 = vmatprep.subr.mxu0 0.0
        %1086 = vmatpush1.msra.mxu0 0.0
        %1087 = vmatprep.subr.mxu0 0.0
        %1088 = vmatpush1.msra.mxu0 0.0
        %1089 = vmatprep.subr.mxu0 0.0
        %1090 = vmatpush1.msra.mxu0 0.0
        %1091 = vmatprep.subr.mxu0 0.0
        %1092 = vmatpush1.msra.mxu0 0.0
        %1093 = vmatprep.subr.mxu0 0.0
        %1094 = vmatpush1.msra.mxu0 0.0
        %1095 = vmatprep.subr.mxu0 0.0
        %1096 = vmatpush1.msra.mxu0 0.0
        %1097 = vmatprep.subr.mxu0 0.0
        %1098 = vmatpush1.msra.mxu0 0.0
        %1099 = vmatprep.subr.mxu0 0.0
        %1100 = vmatpush1.msra.mxu0 0.0
        %1101 = vmatprep.subr.mxu0 0.0
        %1102 = vmatpush1.msra.mxu0 0.0
        %1103 = vmatprep.subr.mxu0 0.0
        %1104 = vmatpush1.msra.mxu0 0.0
        %1105 = vmatprep.subr.mxu0 0.0
        %1106 = vmatpush1.msra.mxu0 0.0
        %1107 = vmatprep.subr.mxu0 0.0
        %1108 = vmatpush1.msra.mxu0 0.0
        %1109 = vmatprep.subr.mxu0 0.0
        %1110 = vmatpush1.msra.mxu0 0.0
        %1111 = vmatprep.subr.mxu0 0.0
        %1112 = vmatpush1.msra.mxu0 0.0
        %1113 = vmatprep.subr.mxu0 0.0
        %1114 = vmatpush1.msra.mxu0 0.0
        %1115 = vmatprep.subr.mxu0 0.0
        %1116 = vmatpush1.msra.mxu0 0.0
        %1117 = vmatprep.subr.mxu0 0.0
        %1118 = vmatpush1.msra.mxu0 0.0
        %1119 = vmatprep.mubr.f32.mxu0 0.0
        %1120 = vmatmul.mubr.f32.gmra.mrb[0].mxu0 %v1053
        %v1121 = vpop.f32.mrb[0].mxu0
        %v1122 = vadd.f32 %v1049, %v1121
        %v1123 = vpop.f32.mrb[0].mxu0
        %v1124 = vadd.f32 %v1049, %v1123
        %1125 = vdwg.mxu0
        %1126 = vmatprep.subr.mxu0 %v1012
        %1127 = vmatpush1.msra.mxu0 %v1011
        %1128 = vmatprep.subr.mxu0 %v1016
        %1129 = vmatpush1.msra.mxu0 %v1015
        %1130 = vmatprep.subr.mxu0 %v1020
        %1131 = vmatpush1.msra.mxu0 %v1019
        %1132 = vmatprep.subr.mxu0 %v1024
        %1133 = vmatpush1.msra.mxu0 %v1023
        %1134 = vmatprep.subr.mxu0 %v1028
        %1135 = vmatpush1.msra.mxu0 %v1027
        %1136 = vmatprep.subr.mxu0 %v1032
        %1137 = vmatpush1.msra.mxu0 %v1031
        %1138 = vmatprep.subr.mxu0 %v1036
        %1139 = vmatpush1.msra.mxu0 %v1035
        %1140 = vmatprep.subr.mxu0 %v1040
        %1141 = vmatpush1.msra.mxu0 %v1039
        %1142 = vmatprep.subr.mxu0 %v1044
        %1143 = vmatpush1.msra.mxu0 %v1043
        %1144 = vmatprep.subr.mxu0 0.0
        %1145 = vmatpush1.msra.mxu0 0.0
        %1146 = vmatprep.subr.mxu0 0.0
        %1147 = vmatpush1.msra.mxu0 0.0
        %1148 = vmatprep.subr.mxu0 0.0
        %1149 = vmatpush1.msra.mxu0 0.0
        %1150 = vmatprep.subr.mxu0 0.0
        %1151 = vmatpush1.msra.mxu0 0.0
        %1152 = vmatprep.subr.mxu0 0.0
        %1153 = vmatpush1.msra.mxu0 0.0
        %1154 = vmatprep.subr.mxu0 0.0
        %1155 = vmatpush1.msra.mxu0 0.0
        %1156 = vmatprep.subr.mxu0 0.0
        %1157 = vmatpush1.msra.mxu0 0.0
        %1158 = vmatprep.subr.mxu0 0.0
        %1159 = vmatpush1.msra.mxu0 0.0
        %1160 = vmatprep.subr.mxu0 0.0
        %1161 = vmatpush1.msra.mxu0 0.0
        %1162 = vmatprep.subr.mxu0 0.0
        %1163 = vmatpush1.msra.mxu0 0.0
        %1164 = vmatprep.subr.mxu0 0.0
        %1165 = vmatpush1.msra.mxu0 0.0
        %1166 = vmatprep.subr.mxu0 0.0
        %1167 = vmatpush1.msra.mxu0 0.0
        %1168 = vmatprep.subr.mxu0 0.0
        %1169 = vmatpush1.msra.mxu0 0.0
        %1170 = vmatprep.subr.mxu0 0.0
        %1171 = vmatpush1.msra.mxu0 0.0
        %1172 = vmatprep.subr.mxu0 0.0
        %1173 = vmatpush1.msra.mxu0 0.0
        %1174 = vmatprep.subr.mxu0 0.0
        %1175 = vmatpush1.msra.mxu0 0.0
        %1176 = vmatprep.subr.mxu0 0.0
        %1177 = vmatpush1.msra.mxu0 0.0
        %1178 = vmatprep.subr.mxu0 0.0
        %1179 = vmatpush1.msra.mxu0 0.0
        %1180 = vmatprep.subr.mxu0 0.0
        %1181 = vmatpush1.msra.mxu0 0.0
        %1182 = vmatprep.subr.mxu0 0.0
        %1183 = vmatpush1.msra.mxu0 0.0
        %1184 = vmatprep.subr.mxu0 0.0
        %1185 = vmatpush1.msra.mxu0 0.0
        %1186 = vmatprep.subr.mxu0 0.0
        %1187 = vmatpush1.msra.mxu0 0.0
        %1188 = vmatprep.subr.mxu0 0.0
        %1189 = vmatpush1.msra.mxu0 0.0
        %1190 = vmatprep.mubr.f32.mxu0 0.0
        %1191 = vmatmul.mubr.f32.gmra.mrb[0].mxu0 %v1053
        %v1192 = vpop.f32.mrb[0].mxu0
        %v1193 = vadd.f32 %v1049, %v1192
        %v1194 = vpop.f32.mrb[0].mxu0
        %v1195 = vadd.f32 %v1049, %v1194
        %1196 = vdwg.mxu0
        %v1201 = vcombine.low %v1122, %v1124
        %v1202 = vcombine.low %v1193, %v1195
        %1205 = vst [vmem:[%s186] sm:$0xff] %v1201
        %1206 = vst [vmem:[%s186 + $0x8] sm:$0xff] %v1202
        %s1207 = sand.u32 %s96, 1
        %s1208 = scalar_lea.sflag [#allocation5], %s1207
        %s1209 = sand.u32 %s96, 1
        %s1210 = smul.addr %s1209, 16
        %s1211 = scalar_lea.vmem [#allocation6], %s1210
        // Predicated region
        $region37: #{tpu_custom_call.1} parent=31 // pred_check
          %p1212 = pneg %p106
        $region38: #{tpu_custom_call.1} parent=31 // pred_check_branch
          %1214 = sbr.rel (%p1212) target = $region40
        $region39: #{tpu_custom_call.1} parent=31 // pred_region
          %s1216 = ssub.s32 256, 256
          %1217 = vsyncadd %s1208, %s1216
          %s1218 = smul.addr %s20, 4
          %s1219 = smul.addr %s1218, 64
          %s1220 = scalar_lea.hbm %s3, %s1219
          %s1222 = sshll.u32 %s1211, 4
          %s1223 = int_to_ptr.vmem [resolvable:$true] %s1222
          %1225 = dma.vmem_to_hbm [thread:$0]  %s1223, 256, %s1220, %s1208
        $region40: #{tpu_custom_call.1} parent=31 // pred_fallthru
          _
      $region32: #{tpu_custom_call.1} parent=5 // pred_fallthru
        _
      %p1226 = scmp.le.s32.totalorder 2, %s15
      // Predicated region
      $region41: #{tpu_custom_call.1} parent=5 // pred_check
        %p1227 = pneg %p1226
      $region42: #{tpu_custom_call.1} parent=5 // pred_check_branch
        %1229 = sbr.rel (%p1227) target = $region44
      $region43: #{tpu_custom_call.1} parent=5 // pred_region
        %s1230 = ssub.s32 %s15, 2
        // Predicated region
        $region45: #{tpu_custom_call.1} parent=43 // pred_check
          %p1231 = pneg %p112
        $region46: #{tpu_custom_call.1} parent=43 // pred_check_branch
          %1233 = sbr.rel (%p1231) target = $region48
        $region47: #{tpu_custom_call.1} parent=43 // pred_region
          %s1234 = sand.u32 %s97, 1
          %s1235 = scalar_lea.sflag [#allocation5], %s1234
          %s1236 = sand.u32 %s97, 1
          %s1237 = smul.addr %s1236, 16
          %s1238 = scalar_lea.vmem [#allocation6], %s1237
          %1239 = dma.done %s1235, 256
        $region48: #{tpu_custom_call.1} parent=43 // pred_fallthru
          _
      $region44: #{tpu_custom_call.1} parent=5 // pred_fallthru
        _
    $region6: #{tpu_custom_call.1} parent=1 // loop_footer
      %s19 = sadd.s32 1, %s15
    $region7: #{tpu_custom_call.1} parent=1 // loop_footer_branch
      %14 = sbr.rel target = $region3
    $region8: #{tpu_custom_call.1} parent=1 // loop_exit
      _
    %1240 = vsyncpa [#allocation4], 1
    %s1241 = scalar_lea.sflag [#allocation4], 1
    %1242 = vsyncpa %s1241, 1
    %1243 = vsyncpa [#allocation5], 1
    %s1244 = scalar_lea.sflag [#allocation5], 1
    %1245 = vsyncpa %s1244, 1

</llo_original>
